<compile_context>
chip_gen: v5e
topology: v5e:2x2
jax: 0.10.0
libtpu: 0.0.40
codegen_flags: <defaults>
</compile_context>

<pallas_src>
import jax
import jax.numpy as jnp
from jax import lax
from jax.experimental import pallas as pl
from jax.experimental.pallas import tpu as pltpu

# ---------------------------------------------------------------------------
# Problem geometry (small shapes consistent with the module)
# ---------------------------------------------------------------------------
C_IN = 4                        # input / reconstruction channels
C_PAD = 8                       # input channels zero-padded to a full sublane group
C_HID = 8                       # encoder feature channels
H = W = 16                      # spatial size
HP, WP = H + 2, W + 2           # zero-padded spatial size for 3x3, pad=1
P = HP * WP                     # padded spatial positions per image (324)
P_PAD = 384                     # lane-padded spatial width (3 * 128)
MARGIN = WP + 1                 # max |tap shift| in flat padded coords (19)
XW = 512                        # extended input lane width (>= 2*MARGIN + P_PAD, mult of 128)
Z = 32                          # latent dim
F = C_HID * H * W               # n_features (2048)
HN = 128                        # fused head width: [mu(32) | log_sigma2(32) | zeros(64)]
NOUT = C_IN * H * W             # folded decoder output width (1024 = 8 * 128)
TAPS = tuple(MARGIN + (t // 3 - 1) * WP + (t % 3 - 1) for t in range(9))


# ---------------------------------------------------------------------------
# Fused Pallas kernel: whole VAE forward for a tile of `btile` images per step
# ---------------------------------------------------------------------------
def _make_vae_kernel(btile):
    def kernel(x_ref, eps_ref, w_enc_ref, b_enc_ref, w_head_ref, b_head_ref,
               w_comb_ref, b_comb_ref, xrec_ref, muls_ref):
        f32 = jnp.float32

        # ---- encoder 3x3 conv (pad=1): ONE K=72 matmul per image ------------
        rows = []
        for b in range(btile):                               # static tile loop
            xb = x_ref[b]                                    # [C_PAD, XW]
            stacked = jnp.concatenate(
                [xb[:, off:off + P_PAD] for off in TAPS], axis=0)  # [72, P_PAD]
            hb = jnp.dot(w_enc_ref[...], stacked,
                         preferred_element_type=f32)         # [C_HID, P_PAD]
            hb = jnp.maximum(hb + b_enc_ref[...], 0.0)       # bias + ReLU
            # channel-major flatten along lanes (lane-aligned 384-wide pieces)
            rows.append(jnp.concatenate(
                [hb[c:c + 1, :] for c in range(C_HID)], axis=1))   # [1, 3072]
        hcat = rows[0] if btile == 1 else jnp.concatenate(rows, axis=0)

        # ---- fused head: [mu | log_sigma2 | 0] in ONE matmul -----------------
        # Head weight rows are zero at halo / lane-pad positions, so garbage
        # conv values outside the valid image contribute exactly nothing.
        muls = jnp.dot(hcat, w_head_ref[...],
                       preferred_element_type=f32) + b_head_ref[...]
        muls_ref[0] = muls                                   # [btile, HN]

        # ---- reparameterize (module semantics: z = eps * exp(log_sigma2) + mu)
        mu = muls[:, :Z]
        ls = muls[:, Z:2 * Z]
        zt = eps_ref[0] * jnp.exp(ls) + mu                   # [btile, Z]

        # ---- folded back_project + decoder conv + tanh (exact, precomputed) --
        pre = jnp.dot(zt, w_comb_ref[...],
                      preferred_element_type=f32) + b_comb_ref[...]
        xrec_ref[0] = jnp.tanh(pre)                          # [btile, NOUT]

    return kernel


def _const_spec(shape):
    return pl.BlockSpec(shape, lambda g: (0,) * len(shape))


def _choose_btile(batch):
    # Tile several images per grid step (amortize ~0.35 us/step overhead, raise
    # matmul M) while keeping >= 2 grid steps so v7x's two TensorCores both work.
    for bt in (16, 8, 4, 2):
        if batch % bt == 0 and batch // bt >= 2:
            return bt
    return 1


def vae_fused_call(x_ext, eps_g, kp, btile):
    B = x_ext.shape[0]
    G = B // btile
    grid_spec = pltpu.PrefetchScalarGridSpec(
        num_scalar_prefetch=0,
        grid=(G,),
        in_specs=[
            pl.BlockSpec((btile, C_PAD, XW), lambda g: (g, 0, 0)),  # x tile
            pl.BlockSpec((1, btile, Z), lambda g: (g, 0, 0)),       # eps tile
            _const_spec((C_HID, 9 * C_PAD)),                        # enc taps (merged K)
            _const_spec((C_HID, 1)),                                # enc bias
            _const_spec((C_HID * P_PAD, HN)),                       # fused head weight
            _const_spec((1, HN)),                                   # fused head bias
            _const_spec((Z, NOUT)),                                 # folded bp+dec weight
            _const_spec((1, NOUT)),                                 # folded bp+dec bias
        ],
        out_specs=(
            pl.BlockSpec((1, btile, NOUT), lambda g: (g, 0, 0)),    # xrec (lane-dense)
            pl.BlockSpec((1, btile, HN), lambda g: (g, 0, 0)),      # [mu | log_sigma2]
        ),
    )
    out_shape = (
        jax.ShapeDtypeStruct((G, btile, NOUT), jnp.float32),
        jax.ShapeDtypeStruct((G, btile, HN), jnp.float32),
    )
    return pl.pallas_call(
        _make_vae_kernel(btile),
        out_shape=out_shape,
        grid_spec=grid_spec,
        compiler_params=pltpu.CompilerParams(
            dimension_semantics=("parallel",),       # image tiles -> both TCs on v7x
            vmem_limit_bytes=32 * 1024 * 1024,       # <= v7x scoped default; ~4 MiB used
        ),
    )(x_ext, eps_g, kp["w_enc"], kp["b_enc"], kp["w_head"], kp["b_head"],
      kp["w_comb"], kp["b_comb"])


# ---------------------------------------------------------------------------
# Parameters (PyTorch-canonical layouts) + one-time kernel-layout preparation
# ---------------------------------------------------------------------------
def init_vae_params(key):
    ks = jax.random.split(key, 10)
    s = 0.05
    return {
        "enc_w": jax.random.normal(ks[0], (C_HID, C_IN, 3, 3), jnp.float32) * s,
        "enc_b": jax.random.normal(ks[1], (C_HID,), jnp.float32) * s,
        "dec_w": jax.random.normal(ks[2], (C_IN, C_HID, 3, 3), jnp.float32) * s,
        "dec_b": jax.random.normal(ks[3], (C_IN,), jnp.float32) * s,
        "w_mu": jax.random.normal(ks[4], (F, Z), jnp.float32) * s,
        "b_mu": jax.random.normal(ks[5], (1, Z), jnp.float32) * s,
        "w_sig": jax.random.normal(ks[6], (F, Z), jnp.float32) * s,
        "b_sig": jax.random.normal(ks[7], (1, Z), jnp.float32) * s,
        "w_bp": jax.random.normal(ks[8], (Z, F), jnp.float32) * s,
        "b_bp": jax.random.normal(ks[9], (1, F), jnp.float32) * s,
    }


def prepare_kernel_params(p):
    """One-time layout prep (plain JAX on tiny weight tensors).

    * enc conv taps -> merged [C_HID, 9*C_PAD] (input channels zero-padded 4->8).
    * head weights -> fused [mu|log_sigma2], scattered to the padded + lane-padded
      spatial layout and flattened to [C_HID*P_PAD, HN]; halo / pad rows are 0.
    * back_project + decoder 3x3 conv + biases -> ONE exact linear map
      W_comb[Z, C_IN*H*W] (+ b_comb), since there is no nonlinearity between them.
    NCHW feature order f = c*H*W + i*W + j (torch .view order) is preserved.
    """
    hi = lax.Precision.HIGHEST

    enc_w_p = jnp.pad(p["enc_w"], ((0, 0), (0, C_PAD - C_IN), (0, 0), (0, 0)))
    w_enc = enc_w_p.transpose(0, 2, 3, 1).reshape(C_HID, 9 * C_PAD)
    b_enc = p["enc_b"].reshape(C_HID, 1)

    w_cat = jnp.concatenate([p["w_mu"], p["w_sig"]], axis=1)          # [F, 2Z]
    w4 = jnp.pad(w_cat.reshape(C_HID, H, W, 2 * Z),
                 ((0, 0), (1, 1), (1, 1), (0, 0))).reshape(C_HID, P, 2 * Z)
    w4 = jnp.pad(w4, ((0, 0), (0, P_PAD - P), (0, HN - 2 * Z)))
    w_head = w4.reshape(C_HID * P_PAD, HN)                            # [3072, 128]
    b_head = jnp.pad(jnp.concatenate([p["b_mu"], p["b_sig"]], axis=1),
                     ((0, 0), (0, HN - 2 * Z)))                       # [1, 128]

    # exact fold of back_project + decoder conv (+ biases)
    wmap = p["w_bp"].reshape(Z, C_HID, H, W)
    w_comb = lax.conv_general_dilated(
        wmap, p["dec_w"], (1, 1), "SAME",
        dimension_numbers=("NCHW", "OIHW", "NCHW"),
        precision=hi).reshape(Z, NOUT)                                # [Z, 1024]
    bmap = lax.conv_general_dilated(
        p["b_bp"].reshape(1, C_HID, H, W), p["dec_w"], (1, 1), "SAME",
        dimension_numbers=("NCHW", "OIHW", "NCHW"), precision=hi)
    b_comb = (bmap + p["dec_b"].reshape(1, C_IN, 1, 1)).reshape(1, NOUT)

    return dict(w_enc=w_enc, b_enc=b_enc, w_head=w_head, b_head=b_head,
                w_comb=w_comb, b_comb=b_comb)


@jax.jit
def vae_forward(kp, x_nchw, eps):
    """Returns (x_rec, mu, log_sigma2) with VAE.forward semantics."""
    B = x_nchw.shape[0]
    btile = _choose_btile(B)
    # pad channels 4->8 and spatial with the conv halo, flatten, add lane margin
    xp = jnp.pad(x_nchw, ((0, 0), (0, C_PAD - C_IN), (1, 1), (1, 1)))
    x_ext = jnp.pad(xp.reshape(B, C_PAD, P),
                    ((0, 0), (0, 0), (MARGIN, XW - P - MARGIN)))      # [B, 8, 512]
    eps_g = eps.reshape(B // btile, btile, Z)
    xr_flat, muls = vae_fused_call(x_ext, eps_g, kp, btile)
    x_rec = xr_flat.reshape(B, C_IN, H, W)
    muls2 = muls.reshape(B, HN)
    return x_rec, muls2[:, :Z], muls2[:, Z:2 * Z]


# ---------------------------------------------------------------------------
# Pure-JAX reference of the same forward (for a numerical self-check)
# ---------------------------------------------------------------------------
def _conv3x3(x, w, b):
    y = lax.conv_general_dilated(x, w, (1, 1), "SAME",
                                 dimension_numbers=("NCHW", "OIHW", "NCHW"),
                                 precision=lax.Precision.HIGHEST)
    return y + b.reshape(1, -1, 1, 1)


def vae_reference(p, x, eps):
    hi = lax.Precision.HIGHEST
    h = jax.nn.relu(_conv3x3(x, p["enc_w"], p["enc_b"]))
    hf = h.reshape(x.shape[0], F)
    mu = jnp.dot(hf, p["w_mu"], precision=hi) + p["b_mu"]
    ls = jnp.dot(hf, p["w_sig"], precision=hi) + p["b_sig"]
    z = eps * jnp.exp(ls) + mu        # module: noise scaled by sigma^2 = exp(ls)
    feats = jnp.dot(z, p["w_bp"], precision=hi) + p["b_bp"]
    fmap = feats.reshape(x.shape[0], C_HID, H, W)
    xr = jnp.tanh(_conv3x3(fmap, p["dec_w"], p["dec_b"]))
    return xr, mu, ls


if __name__ == "__main__":
    B = 2
    key = jax.random.PRNGKey(0)
    k_param, k_x, k_eps = jax.random.split(key, 3)

    params = init_vae_params(k_param)
    kparams = prepare_kernel_params(params)          # one-time layout prep
    x = jax.random.normal(k_x, (B, C_IN, H, W), jnp.float32)
    # TODO(synk): torch.randn reparameterization noise is drawn inside encode();
    # here it is deterministic JAX noise passed into the fused kernel as `eps`.
    eps = jax.random.normal(k_eps, (B, Z), jnp.float32)

    x_rec, mu, log_sigma2 = vae_forward(kparams, x, eps)
    jax.block_until_ready((x_rec, mu, log_sigma2))

    assert x_rec.shape == (B, C_IN, H, W)
    assert mu.shape == (B, Z) and log_sigma2.shape == (B, Z)

    # numerical self-check against the pure-JAX reference
    xr_r, mu_r, ls_r = vae_reference(params, x, eps)
    err = max(float(jnp.max(jnp.abs(x_rec - xr_r))),
              float(jnp.max(jnp.abs(mu - mu_r))),
              float(jnp.max(jnp.abs(log_sigma2 - ls_r))))
    assert err < 1e-2, f"kernel/reference mismatch: max abs err = {err}"

    print("KERNEL_OK")
</pallas_src>

<mosaic_0001>
module attributes {stable_mosaic.version = 11 : i64} {
  func.func @kernel(%arg0: i32, %arg1: memref<1x8x512xf32, #tpu.memory_space<vmem>>, %arg2: memref<1x1x32xf32, #tpu.memory_space<vmem>>, %arg3: memref<8x72xf32, #tpu.memory_space<vmem>>, %arg4: memref<8x1xf32, #tpu.memory_space<vmem>>, %arg5: memref<3072x128xf32, #tpu.memory_space<vmem>>, %arg6: memref<1x128xf32, #tpu.memory_space<vmem>>, %arg7: memref<32x1024xf32, #tpu.memory_space<vmem>>, %arg8: memref<1x1024xf32, #tpu.memory_space<vmem>>, %arg9: memref<1x1x1024xf32, #tpu.memory_space<vmem>>, %arg10: memref<1x1x128xf32, #tpu.memory_space<vmem>>) attributes {dimension_semantics = [#tpu.dimension_semantics<parallel>], iteration_bounds = array<i64: 2>, scalar_prefetch = 0 : i64, scratch_operands = 0 : i64, tpu.core_type = #tpu.core_type<tc>, window_params = [{transform_indices = @transform_0, window_bounds = array<i64: 1, 8, 512>}, {transform_indices = @transform_1, window_bounds = array<i64: 1, 1, 32>}, {pipeline_mode = #tpu.pipeline_mode<synchronous>, transform_indices = @transform_2, window_bounds = array<i64: 8, 72>}, {pipeline_mode = #tpu.pipeline_mode<synchronous>, transform_indices = @transform_3, window_bounds = array<i64: 8, 1>}, {pipeline_mode = #tpu.pipeline_mode<synchronous>, transform_indices = @transform_4, window_bounds = array<i64: 3072, 128>}, {pipeline_mode = #tpu.pipeline_mode<synchronous>, transform_indices = @transform_5, window_bounds = array<i64: 1, 128>}, {pipeline_mode = #tpu.pipeline_mode<synchronous>, transform_indices = @transform_6, window_bounds = array<i64: 32, 1024>}, {pipeline_mode = #tpu.pipeline_mode<synchronous>, transform_indices = @transform_7, window_bounds = array<i64: 1, 1024>}, {transform_indices = @transform_8, window_bounds = array<i64: 1, 1, 1024>}, {transform_indices = @transform_9, window_bounds = array<i64: 1, 1, 128>}]} {
    %c0 = arith.constant 0 : index
    %c0_0 = arith.constant 0 : index
    %c0_1 = arith.constant 0 : index
    %0 = vector.load %arg1[%c0, %c0_0, %c0_1] : memref<1x8x512xf32, #tpu.memory_space<vmem>>, vector<1x8x512xf32>
    %1 = vector.shape_cast %0 : vector<1x8x512xf32> to vector<8x512xf32>
    %2 = vector.extract_strided_slice %1 {offsets = [0, 0], sizes = [8, 384], strides = [1, 1]} : vector<8x512xf32> to vector<8x384xf32>
    %3 = vector.extract_strided_slice %1 {offsets = [0, 1], sizes = [8, 384], strides = [1, 1]} : vector<8x512xf32> to vector<8x384xf32>
    %4 = vector.extract_strided_slice %1 {offsets = [0, 2], sizes = [8, 384], strides = [1, 1]} : vector<8x512xf32> to vector<8x384xf32>
    %5 = vector.extract_strided_slice %1 {offsets = [0, 18], sizes = [8, 384], strides = [1, 1]} : vector<8x512xf32> to vector<8x384xf32>
    %6 = vector.extract_strided_slice %1 {offsets = [0, 19], sizes = [8, 384], strides = [1, 1]} : vector<8x512xf32> to vector<8x384xf32>
    %7 = vector.extract_strided_slice %1 {offsets = [0, 20], sizes = [8, 384], strides = [1, 1]} : vector<8x512xf32> to vector<8x384xf32>
    %8 = vector.extract_strided_slice %1 {offsets = [0, 36], sizes = [8, 384], strides = [1, 1]} : vector<8x512xf32> to vector<8x384xf32>
    %9 = vector.extract_strided_slice %1 {offsets = [0, 37], sizes = [8, 384], strides = [1, 1]} : vector<8x512xf32> to vector<8x384xf32>
    %10 = vector.extract_strided_slice %1 {offsets = [0, 38], sizes = [8, 384], strides = [1, 1]} : vector<8x512xf32> to vector<8x384xf32>
    %11 = tpu.concatenate %2, %3, %4, %5, %6, %7, %8, %9, %10 in 0 : vector<8x384xf32>, vector<8x384xf32>, vector<8x384xf32>, vector<8x384xf32>, vector<8x384xf32>, vector<8x384xf32>, vector<8x384xf32>, vector<8x384xf32>, vector<8x384xf32> -> vector<72x384xf32>
    %c0_2 = arith.constant 0 : index
    %c0_3 = arith.constant 0 : index
    %12 = vector.load %arg3[%c0_2, %c0_3] : memref<8x72xf32, #tpu.memory_space<vmem>>, vector<8x72xf32>
    %cst = arith.constant dense<0.000000e+00> : vector<8x384xf32>
    %13 = tpu.matmul %12, %11, %cst {dimension_numbers = #tpu.dot_dimension_numbers<[1], [0], [0], [1], [0, 0, 1, 1], [], []>} : vector<8x72xf32>, vector<72x384xf32>, vector<8x384xf32> -> vector<8x384xf32>
    %c0_4 = arith.constant 0 : index
    %c0_5 = arith.constant 0 : index
    %14 = vector.load %arg4[%c0_4, %c0_5] : memref<8x1xf32, #tpu.memory_space<vmem>>, vector<8x1xf32>
    %15 = vector.broadcast %14 : vector<8x1xf32> to vector<8x384xf32>
    %16 = arith.addf %13, %15 : vector<8x384xf32>
    %cst_6 = arith.constant 0.000000e+00 : f32
    %17 = vector.broadcast %cst_6 : f32 to vector<8x384xf32>
    %18 = arith.maximumf %16, %17 : vector<8x384xf32>
    %19 = vector.extract_strided_slice %18 {offsets = [0, 0], sizes = [1, 384], strides = [1, 1]} : vector<8x384xf32> to vector<1x384xf32>
    %20 = vector.extract_strided_slice %18 {offsets = [1, 0], sizes = [1, 384], strides = [1, 1]} : vector<8x384xf32> to vector<1x384xf32>
    %21 = vector.extract_strided_slice %18 {offsets = [2, 0], sizes = [1, 384], strides = [1, 1]} : vector<8x384xf32> to vector<1x384xf32>
    %22 = vector.extract_strided_slice %18 {offsets = [3, 0], sizes = [1, 384], strides = [1, 1]} : vector<8x384xf32> to vector<1x384xf32>
    %23 = vector.extract_strided_slice %18 {offsets = [4, 0], sizes = [1, 384], strides = [1, 1]} : vector<8x384xf32> to vector<1x384xf32>
    %24 = vector.extract_strided_slice %18 {offsets = [5, 0], sizes = [1, 384], strides = [1, 1]} : vector<8x384xf32> to vector<1x384xf32>
    %25 = vector.extract_strided_slice %18 {offsets = [6, 0], sizes = [1, 384], strides = [1, 1]} : vector<8x384xf32> to vector<1x384xf32>
    %26 = vector.extract_strided_slice %18 {offsets = [7, 0], sizes = [1, 384], strides = [1, 1]} : vector<8x384xf32> to vector<1x384xf32>
    %27 = tpu.concatenate %19, %20, %21, %22, %23, %24, %25, %26 in 1 : vector<1x384xf32>, vector<1x384xf32>, vector<1x384xf32>, vector<1x384xf32>, vector<1x384xf32>, vector<1x384xf32>, vector<1x384xf32>, vector<1x384xf32> -> vector<1x3072xf32>
    %c0_7 = arith.constant 0 : index
    %c0_8 = arith.constant 0 : index
    %28 = vector.load %arg5[%c0_7, %c0_8] : memref<3072x128xf32, #tpu.memory_space<vmem>>, vector<3072x128xf32>
    %cst_9 = arith.constant dense<0.000000e+00> : vector<1x128xf32>
    %29 = tpu.matmul %27, %28, %cst_9 {dimension_numbers = #tpu.dot_dimension_numbers<[1], [0], [0], [1], [0, 0, 1, 1], [], []>} : vector<1x3072xf32>, vector<3072x128xf32>, vector<1x128xf32> -> vector<1x128xf32>
    %c0_10 = arith.constant 0 : index
    %c0_11 = arith.constant 0 : index
    %30 = vector.load %arg6[%c0_10, %c0_11] : memref<1x128xf32, #tpu.memory_space<vmem>>, vector<1x128xf32>
    %31 = arith.addf %29, %30 : vector<1x128xf32>
    %c0_12 = arith.constant 0 : index
    %c0_13 = arith.constant 0 : index
    %c0_14 = arith.constant 0 : index
    %32 = vector.load %arg10[%c0_12, %c0_13, %c0_14] : memref<1x1x128xf32, #tpu.memory_space<vmem>>, vector<1x1x128xf32>
    %33 = vector.shape_cast %32 : vector<1x1x128xf32> to vector<1x128xf32>
    %34 = vector.shape_cast %31 : vector<1x128xf32> to vector<1x1x128xf32>
    tpu.vector_store %arg10[%c0_12, %c0_13, %c0_14], %34 {strides = array<i32>} : memref<1x1x128xf32, #tpu.memory_space<vmem>>, vector<1x1x128xf32>,
    %35 = vector.extract_strided_slice %31 {offsets = [0, 0], sizes = [1, 32], strides = [1, 1]} : vector<1x128xf32> to vector<1x32xf32>
    %36 = vector.extract_strided_slice %31 {offsets = [0, 32], sizes = [1, 32], strides = [1, 1]} : vector<1x128xf32> to vector<1x32xf32>
    %c0_15 = arith.constant 0 : index
    %c0_16 = arith.constant 0 : index
    %c0_17 = arith.constant 0 : index
    %37 = vector.load %arg2[%c0_15, %c0_16, %c0_17] : memref<1x1x32xf32, #tpu.memory_space<vmem>>, vector<1x1x32xf32>
    %38 = vector.shape_cast %37 : vector<1x1x32xf32> to vector<1x32xf32>
    %39 = math.exp %36 : vector<1x32xf32>
    %40 = arith.mulf %38, %39 : vector<1x32xf32>
    %41 = arith.addf %40, %35 : vector<1x32xf32>
    %c0_18 = arith.constant 0 : index
    %c0_19 = arith.constant 0 : index
    %42 = vector.load %arg7[%c0_18, %c0_19] : memref<32x1024xf32, #tpu.memory_space<vmem>>, vector<32x1024xf32>
    %cst_20 = arith.constant dense<0.000000e+00> : vector<1x1024xf32>
    %43 = tpu.matmul %41, %42, %cst_20 {dimension_numbers = #tpu.dot_dimension_numbers<[1], [0], [0], [1], [0, 0, 1, 1], [], []>} : vector<1x32xf32>, vector<32x1024xf32>, vector<1x1024xf32> -> vector<1x1024xf32>
    %c0_21 = arith.constant 0 : index
    %c0_22 = arith.constant 0 : index
    %44 = vector.load %arg8[%c0_21, %c0_22] : memref<1x1024xf32, #tpu.memory_space<vmem>>, vector<1x1024xf32>
    %45 = arith.addf %43, %44 : vector<1x1024xf32>
    %46 = math.tanh %45 : vector<1x1024xf32>
    %c0_23 = arith.constant 0 : index
    %c0_24 = arith.constant 0 : index
    %c0_25 = arith.constant 0 : index
    %47 = vector.load %arg9[%c0_23, %c0_24, %c0_25] : memref<1x1x1024xf32, #tpu.memory_space<vmem>>, vector<1x1x1024xf32>
    %48 = vector.shape_cast %47 : vector<1x1x1024xf32> to vector<1x1024xf32>
    %49 = vector.shape_cast %46 : vector<1x1024xf32> to vector<1x1x1024xf32>
    tpu.vector_store %arg9[%c0_23, %c0_24, %c0_25], %49 {strides = array<i32>} : memref<1x1x1024xf32, #tpu.memory_space<vmem>>, vector<1x1x1024xf32>,
    return
  }
  func.func @transform_0(%arg0: i32) -> (i32, i32, i32) {
    %c0_i32 = arith.constant 0 : i32
    %c0_i32_0 = arith.constant 0 : i32
    %c0_i32_1 = arith.constant 0 : i32
    return %arg0, %c0_i32, %c0_i32_0 : i32, i32, i32
  }
  func.func @transform_1(%arg0: i32) -> (i32, i32, i32) {
    %c0_i32 = arith.constant 0 : i32
    %c0_i32_0 = arith.constant 0 : i32
    %c0_i32_1 = arith.constant 0 : i32
    return %arg0, %c0_i32, %c0_i32_0 : i32, i32, i32
  }
  func.func @transform_2(%arg0: i32) -> (i32, i32) {
    %c0_i32 = arith.constant 0 : i32
    %c0_i32_0 = arith.constant 0 : i32
    %c0_i32_1 = arith.constant 0 : i32
    return %c0_i32, %c0_i32_0 : i32, i32
  }
  func.func @transform_3(%arg0: i32) -> (i32, i32) {
    %c0_i32 = arith.constant 0 : i32
    %c0_i32_0 = arith.constant 0 : i32
    %c0_i32_1 = arith.constant 0 : i32
    return %c0_i32, %c0_i32_0 : i32, i32
  }
  func.func @transform_4(%arg0: i32) -> (i32, i32) {
    %c0_i32 = arith.constant 0 : i32
    %c0_i32_0 = arith.constant 0 : i32
    %c0_i32_1 = arith.constant 0 : i32
    return %c0_i32, %c0_i32_0 : i32, i32
  }
  func.func @transform_5(%arg0: i32) -> (i32, i32) {
    %c0_i32 = arith.constant 0 : i32
    %c0_i32_0 = arith.constant 0 : i32
    %c0_i32_1 = arith.constant 0 : i32
    return %c0_i32, %c0_i32_0 : i32, i32
  }
  func.func @transform_6(%arg0: i32) -> (i32, i32) {
    %c0_i32 = arith.constant 0 : i32
    %c0_i32_0 = arith.constant 0 : i32
    %c0_i32_1 = arith.constant 0 : i32
    return %c0_i32, %c0_i32_0 : i32, i32
  }
  func.func @transform_7(%arg0: i32) -> (i32, i32) {
    %c0_i32 = arith.constant 0 : i32
    %c0_i32_0 = arith.constant 0 : i32
    %c0_i32_1 = arith.constant 0 : i32
    return %c0_i32, %c0_i32_0 : i32, i32
  }
  func.func @transform_8(%arg0: i32) -> (i32, i32, i32) {
    %c0_i32 = arith.constant 0 : i32
    %c0_i32_0 = arith.constant 0 : i32
    %c0_i32_1 = arith.constant 0 : i32
    return %arg0, %c0_i32, %c0_i32_0 : i32, i32, i32
  }
  func.func @transform_9(%arg0: i32) -> (i32, i32, i32) {
    %c0_i32 = arith.constant 0 : i32
    %c0_i32_0 = arith.constant 0 : i32
    %c0_i32_1 = arith.constant 0 : i32
    return %arg0, %c0_i32, %c0_i32_0 : i32, i32, i32
  }
}

</mosaic_0001>

<llo_original>
// kernel: vae_forward.1
$region0: #{vae_forward.1}
  #allocation0 [shape = 'u32[]', space=smem, size = 0x4, offset = 0x4, fixed_abs, tag = 'smem constant byte address 0x4 - core index']
  #allocation1 [shape = 'u32[72,128]{1,0:T(1,128)}', space=vmem, size = 0x9000, scoped, tag = 'internal scratch']
  %s0 = inlined_call_operand.vmem [shape: f32[2,8,512], index: 0, kind: input, shape index: {}]
  %s1 = inlined_call_operand.hbm [shape: f32[2,1,32], index: 1, kind: input, shape index: {}]
  %s2 = inlined_call_operand.hbm [shape: f32[8,72], index: 2, kind: input, shape index: {}]
  %s3 = inlined_call_operand.vmem [shape: f32[8,1], index: 3, kind: input, shape index: {}]
  %s4 = inlined_call_operand.hbm [shape: f32[3072,128], index: 4, kind: input, shape index: {}]
  %s5 = inlined_call_operand.hbm [shape: f32[1,128], index: 5, kind: input, shape index: {}]
  %s6 = inlined_call_operand.hbm [shape: f32[32,1024], index: 6, kind: input, shape index: {}]
  %s7 = inlined_call_operand.hbm [shape: f32[1,1024], index: 7, kind: input, shape index: {}]
  %s8 = inlined_call_operand.vmem [shape: f32[2,1,1024], index: 8, kind: output, shape index: {0}]
  %s9 = inlined_call_operand.vmem [shape: f32[2,1,128], index: 9, kind: output, shape index: {1}]
  %10 = xla_tuple %s8, %s9
  %s11 = sld [smem:[#allocation0]]
  $region97: #{vae_forward.1} parent=0
    _
  %s13 = ssub.s32 1, %s11
  %s14 = scalar_select 0, %s13, %s11
  $region1: #{vae_forward.1} parent=0
    #allocation2 [shape = 'u8[1024]{0}', space=vmem, size = 0x400, scoped, tag = 'input window, operand 1']
    #allocation3 [shape = 's32[2]{0}', space=sflag, size = 0x8, scoped, tag = 'scoped memory for vae_forward.1']
    #allocation4 [shape = 'u8[4096]{0}', space=vmem, size = 0x1000, scoped, tag = 'input window, operand 2, single buffered']
    #allocation5 [shape = 's32[1]{0}', space=sflag, size = 0x4, scoped, tag = 'scoped memory for vae_forward.1']
    #allocation6 [shape = 'u8[1572864]{0}', space=vmem, size = 0x180000, scoped, tag = 'input window, operand 4, single buffered']
    #allocation7 [shape = 'u8[512]{0}', space=vmem, size = 0x400, scoped, tag = 'input window, operand 5, single buffered']
    #allocation8 [shape = 's32[1]{0}', space=sflag, size = 0x4, scoped, tag = 'scoped memory for vae_forward.1']
    #allocation9 [shape = 'u8[131072]{0}', space=vmem, size = 0x20000, scoped, tag = 'input window, operand 6, single buffered']
    #allocation10 [shape = 'u8[4096]{0}', space=vmem, size = 0x1000, scoped, tag = 'input window, operand 7, single buffered']
    #allocation11 [shape = 's32[1]{0}', space=sflag, size = 0x4, scoped, tag = 'scoped memory for vae_forward.1']
    %15 = vsyncpa [#allocation3], 0
    %s16 = scalar_lea.sflag [#allocation3], 1
    %17 = vsyncpa %s16, 0
    %18 = vsyncpa [#allocation5], 0
    %19 = vsyncpa [#allocation8], 0
    %20 = vsyncpa [#allocation11], 0
    loop: start=0, step=1, limit=4
    $region2: #{vae_forward.1} parent=1 // loop_pre_header
      _
    $region3: #{vae_forward.1} parent=1 // loop_header
      %s22 = sphi 0, %s26
      %p23 = scmp.ge.s32.totalorder %s22, 4
      %s32 = sphi 0, %s34
      %s35 = sphi 0, %s32
      %s36 = sphi 0, %s35
      %s52 = sphi 0, %s36
      %s58 = sphi 0, %s60
      %s61 = sphi 0, %s58
      %s62 = sphi 0, %s61
      %s78 = sphi 0, %s62
      %s82 = sphi 0, %s82
      %s84 = sphi 0, %s82
      %s85 = sphi 0, %s84
      %s99 = sphi 0, %s85
      %s103 = sphi 0, %s103
      %s105 = sphi 0, %s103
      %s106 = sphi 0, %s105
      %s120 = sphi 0, %s106
      %s124 = sphi 0, %s124
      %s126 = sphi 0, %s124
      %s127 = sphi 0, %s126
      %s141 = sphi 0, %s127
      %s145 = sphi 0, %s145
      %s147 = sphi 0, %s145
      %s148 = sphi 0, %s147
      %s162 = sphi 0, %s148
      %s166 = sphi 0, %s166
      %s168 = sphi 0, %s166
      %s169 = sphi 0, %s168
      %s183 = sphi 0, %s169
      %s187 = sphi 0, %s187
      %s189 = sphi 0, %s187
      %s190 = sphi 0, %s189
      %s204 = sphi 0, %s190
      %s210 = sphi 0, %s212
      %s213 = sphi 0, %s210
      %s214 = sphi 0, %s213
      %s230 = sphi 0, %s214
      %s236 = sphi 0, %s238
      %s239 = sphi 0, %s236
      %s240 = sphi 0, %s239
      %s256 = sphi 0, %s240
    $region4: #{vae_forward.1} parent=1 // loop_header_branch
      %25 = sbr.rel (%p23) target = $region8
    $region5: #{vae_forward.1} parent=1 // loop_body
      %s27 = ssub.s32 %s22, 1
      %s28 = ssub.s32 %s22, 2
      %s29 = sadd.s32 %s22, 1
      %s30 = ssub.s32 %s22, %s29
      %p31 = scmp.eq.s32.totalorder %s30, 0
      %s33 = sadd.s32 %s32, 1
      %s34 = scalar_select %p31, %s32, %s33
      %p37 = pneg %p31
      %p38 = scmp.eq.s32.totalorder %s22, 1
      %p39 = por %p37, %p38
      %p40 = scmp.ne.s32.totalorder %s32, %s35
      %p41 = scmp.eq.s32.totalorder %s22, 0
      %p42 = por %p40, %p41
      %p43 = scmp.ne.s32.totalorder %s32, %s35
      %p44 = scmp.eq.s32.totalorder %s27, 1
      %p45 = por %p43, %p44
      %p46 = scmp.ne.s32.totalorder %s35, %s36
      %p47 = scmp.eq.s32.totalorder %s27, 0
      %p48 = por %p46, %p47
      %p49 = scmp.ne.s32.totalorder %s35, %s36
      %p50 = scmp.eq.s32.totalorder %s28, 1
      %p51 = por %p49, %p50
      %p53 = scmp.ne.s32.totalorder %s36, %s52
      %p54 = scmp.eq.s32.totalorder %s28, 0
      %p55 = por %p53, %p54
      %s56 = ssub.s32 %s22, %s29
      %p57 = scmp.eq.s32.totalorder %s56, 0
      %s59 = sadd.s32 %s58, 1
      %s60 = scalar_select %p57, %s58, %s59
      %p63 = pneg %p57
      %p64 = scmp.eq.s32.totalorder %s22, 1
      %p65 = por %p63, %p64
      %p66 = scmp.ne.s32.totalorder %s58, %s61
      %p67 = scmp.eq.s32.totalorder %s22, 0
      %p68 = por %p66, %p67
      %p69 = scmp.ne.s32.totalorder %s58, %s61
      %p70 = scmp.eq.s32.totalorder %s27, 1
      %p71 = por %p69, %p70
      %p72 = scmp.ne.s32.totalorder %s61, %s62
      %p73 = scmp.eq.s32.totalorder %s27, 0
      %p74 = por %p72, %p73
      %p75 = scmp.ne.s32.totalorder %s61, %s62
      %p76 = scmp.eq.s32.totalorder %s28, 1
      %p77 = por %p75, %p76
      %p79 = scmp.ne.s32.totalorder %s62, %s78
      %p80 = scmp.eq.s32.totalorder %s28, 0
      %p81 = por %p79, %p80
      %s83 = sadd.s32 %s82, 1
      %p86 = scmp.eq.s32.totalorder %s22, 1
      %p87 = scmp.ne.s32.totalorder %s82, %s84
      %p88 = scmp.eq.s32.totalorder %s22, 0
      %p89 = por %p87, %p88
      %p90 = scmp.ne.s32.totalorder %s82, %s84
      %p91 = scmp.eq.s32.totalorder %s27, 1
      %p92 = por %p90, %p91
      %p93 = scmp.ne.s32.totalorder %s84, %s85
      %p94 = scmp.eq.s32.totalorder %s27, 0
      %p95 = por %p93, %p94
      %p96 = scmp.ne.s32.totalorder %s84, %s85
      %p97 = scmp.eq.s32.totalorder %s28, 1
      %p98 = por %p96, %p97
      %p100 = scmp.ne.s32.totalorder %s85, %s99
      %p101 = scmp.eq.s32.totalorder %s28, 0
      %p102 = por %p100, %p101
      %s104 = sadd.s32 %s103, 1
      %p107 = scmp.eq.s32.totalorder %s22, 1
      %p108 = scmp.ne.s32.totalorder %s103, %s105
      %p109 = scmp.eq.s32.totalorder %s22, 0
      %p110 = por %p108, %p109
      %p111 = scmp.ne.s32.totalorder %s103, %s105
      %p112 = scmp.eq.s32.totalorder %s27, 1
      %p113 = por %p111, %p112
      %p114 = scmp.ne.s32.totalorder %s105, %s106
      %p115 = scmp.eq.s32.totalorder %s27, 0
      %p116 = por %p114, %p115
      %p117 = scmp.ne.s32.totalorder %s105, %s106
      %p118 = scmp.eq.s32.totalorder %s28, 1
      %p119 = por %p117, %p118
      %p121 = scmp.ne.s32.totalorder %s106, %s120
      %p122 = scmp.eq.s32.totalorder %s28, 0
      %p123 = por %p121, %p122
      %s125 = sadd.s32 %s124, 1
      %p128 = scmp.eq.s32.totalorder %s22, 1
      %p129 = scmp.ne.s32.totalorder %s124, %s126
      %p130 = scmp.eq.s32.totalorder %s22, 0
      %p131 = por %p129, %p130
      %p132 = scmp.ne.s32.totalorder %s124, %s126
      %p133 = scmp.eq.s32.totalorder %s27, 1
      %p134 = por %p132, %p133
      %p135 = scmp.ne.s32.totalorder %s126, %s127
      %p136 = scmp.eq.s32.totalorder %s27, 0
      %p137 = por %p135, %p136
      %p138 = scmp.ne.s32.totalorder %s126, %s127
      %p139 = scmp.eq.s32.totalorder %s28, 1
      %p140 = por %p138, %p139
      %p142 = scmp.ne.s32.totalorder %s127, %s141
      %p143 = scmp.eq.s32.totalorder %s28, 0
      %p144 = por %p142, %p143
      %s146 = sadd.s32 %s145, 1
      %p149 = scmp.eq.s32.totalorder %s22, 1
      %p150 = scmp.ne.s32.totalorder %s145, %s147
      %p151 = scmp.eq.s32.totalorder %s22, 0
      %p152 = por %p150, %p151
      %p153 = scmp.ne.s32.totalorder %s145, %s147
      %p154 = scmp.eq.s32.totalorder %s27, 1
      %p155 = por %p153, %p154
      %p156 = scmp.ne.s32.totalorder %s147, %s148
      %p157 = scmp.eq.s32.totalorder %s27, 0
      %p158 = por %p156, %p157
      %p159 = scmp.ne.s32.totalorder %s147, %s148
      %p160 = scmp.eq.s32.totalorder %s28, 1
      %p161 = por %p159, %p160
      %p163 = scmp.ne.s32.totalorder %s148, %s162
      %p164 = scmp.eq.s32.totalorder %s28, 0
      %p165 = por %p163, %p164
      %s167 = sadd.s32 %s166, 1
      %p170 = scmp.eq.s32.totalorder %s22, 1
      %p171 = scmp.ne.s32.totalorder %s166, %s168
      %p172 = scmp.eq.s32.totalorder %s22, 0
      %p173 = por %p171, %p172
      %p174 = scmp.ne.s32.totalorder %s166, %s168
      %p175 = scmp.eq.s32.totalorder %s27, 1
      %p176 = por %p174, %p175
      %p177 = scmp.ne.s32.totalorder %s168, %s169
      %p178 = scmp.eq.s32.totalorder %s27, 0
      %p179 = por %p177, %p178
      %p180 = scmp.ne.s32.totalorder %s168, %s169
      %p181 = scmp.eq.s32.totalorder %s28, 1
      %p182 = por %p180, %p181
      %p184 = scmp.ne.s32.totalorder %s169, %s183
      %p185 = scmp.eq.s32.totalorder %s28, 0
      %p186 = por %p184, %p185
      %s188 = sadd.s32 %s187, 1
      %p191 = scmp.eq.s32.totalorder %s22, 1
      %p192 = scmp.ne.s32.totalorder %s187, %s189
      %p193 = scmp.eq.s32.totalorder %s22, 0
      %p194 = por %p192, %p193
      %p195 = scmp.ne.s32.totalorder %s187, %s189
      %p196 = scmp.eq.s32.totalorder %s27, 1
      %p197 = por %p195, %p196
      %p198 = scmp.ne.s32.totalorder %s189, %s190
      %p199 = scmp.eq.s32.totalorder %s27, 0
      %p200 = por %p198, %p199
      %p201 = scmp.ne.s32.totalorder %s189, %s190
      %p202 = scmp.eq.s32.totalorder %s28, 1
      %p203 = por %p201, %p202
      %p205 = scmp.ne.s32.totalorder %s190, %s204
      %p206 = scmp.eq.s32.totalorder %s28, 0
      %p207 = por %p205, %p206
      %s208 = ssub.s32 %s22, %s29
      %p209 = scmp.eq.s32.totalorder %s208, 0
      %s211 = sadd.s32 %s210, 1
      %s212 = scalar_select %p209, %s210, %s211
      %p215 = pneg %p209
      %p216 = scmp.eq.s32.totalorder %s22, 1
      %p217 = por %p215, %p216
      %p218 = scmp.ne.s32.totalorder %s210, %s213
      %p219 = scmp.eq.s32.totalorder %s22, 0
      %p220 = por %p218, %p219
      %p221 = scmp.ne.s32.totalorder %s210, %s213
      %p222 = scmp.eq.s32.totalorder %s27, 1
      %p223 = por %p221, %p222
      %p224 = scmp.ne.s32.totalorder %s213, %s214
      %p225 = scmp.eq.s32.totalorder %s27, 0
      %p226 = por %p224, %p225
      %p227 = scmp.ne.s32.totalorder %s213, %s214
      %p228 = scmp.eq.s32.totalorder %s28, 1
      %p229 = por %p227, %p228
      %p231 = scmp.ne.s32.totalorder %s214, %s230
      %p232 = scmp.eq.s32.totalorder %s28, 0
      %p233 = por %p231, %p232
      %s234 = ssub.s32 %s22, %s29
      %p235 = scmp.eq.s32.totalorder %s234, 0
      %s237 = sadd.s32 %s236, 1
      %s238 = scalar_select %p235, %s236, %s237
      %p241 = pneg %p235
      %p242 = scmp.eq.s32.totalorder %s22, 1
      %p243 = por %p241, %p242
      %p244 = scmp.ne.s32.totalorder %s236, %s239
      %p245 = scmp.eq.s32.totalorder %s22, 0
      %p246 = por %p244, %p245
      %p247 = scmp.ne.s32.totalorder %s236, %s239
      %p248 = scmp.eq.s32.totalorder %s27, 1
      %p249 = por %p247, %p248
      %p250 = scmp.ne.s32.totalorder %s239, %s240
      %p251 = scmp.eq.s32.totalorder %s27, 0
      %p252 = por %p250, %p251
      %p253 = scmp.ne.s32.totalorder %s239, %s240
      %p254 = scmp.eq.s32.totalorder %s28, 1
      %p255 = por %p253, %p254
      %p257 = scmp.ne.s32.totalorder %s240, %s256
      %p258 = scmp.eq.s32.totalorder %s28, 0
      %p259 = por %p257, %p258
      %p260 = scmp.le.s32.totalorder 1, %s22
      %p261 = scmp.lt.s32.totalorder %s22, 3
      %p262 = pnand %p260, %p261
      %p263 = pneg %p262
      // Predicated region
      $region9: #{vae_forward.1} parent=5 // pred_check
        _
      $region10: #{vae_forward.1} parent=5 // pred_check_branch
        %265 = sbr.rel (%p262) target = $region12
      $region11: #{vae_forward.1} parent=5 // pred_region
        %s266 = ssub.s32 %s22, 1
        // Predicated region
        $region13: #{vae_forward.1} parent=11 // pred_check
          %p267 = pneg %p95
        $region14: #{vae_forward.1} parent=11 // pred_check_branch
          %269 = sbr.rel (%p267) target = $region16
        $region15: #{vae_forward.1} parent=11 // pred_region
          %271 = vsyncadd [#allocation5], 0
          %s273 = sshll.u32 %s2, 4
          %s274 = int_to_ptr.hbm [resolvable:$true] %s273
          %s275 = sshll.u32 [#allocation4], 4
          %s276 = int_to_ptr.vmem [resolvable:$true] %s275
          %278 = dma.hbm_to_vmem [thread:$0]  %s274, 128, %s276, [#allocation5]
        $region16: #{vae_forward.1} parent=11 // pred_fallthru
          _
        // Predicated region
        $region17: #{vae_forward.1} parent=11 // pred_check
          %p279 = pneg %p116
        $region18: #{vae_forward.1} parent=11 // pred_check_branch
          %281 = sbr.rel (%p279) target = $region20
        $region19: #{vae_forward.1} parent=11 // pred_region
          _
        $region20: #{vae_forward.1} parent=11 // pred_fallthru
          _
        // Predicated region
        $region21: #{vae_forward.1} parent=11 // pred_check
          %p282 = pneg %p137
        $region22: #{vae_forward.1} parent=11 // pred_check_branch
          %284 = sbr.rel (%p282) target = $region24
        $region23: #{vae_forward.1} parent=11 // pred_region
          %286 = vsyncadd [#allocation5], 0
          %s287 = sshll.u32 %s4, 4
          %s288 = int_to_ptr.hbm [resolvable:$true] %s287
          %s289 = sshll.u32 [#allocation6], 4
          %s290 = int_to_ptr.vmem [resolvable:$true] %s289
          %295 = dma.hbm_to_vmem [thread:$0]  %s288, 49152, %s290, [#allocation5], 128, 128, 8
        $region24: #{vae_forward.1} parent=11 // pred_fallthru
          _
        // Predicated region
        $region25: #{vae_forward.1} parent=11 // pred_check
          %p296 = pneg %p158
        $region26: #{vae_forward.1} parent=11 // pred_check_branch
          %298 = sbr.rel (%p296) target = $region28
        $region27: #{vae_forward.1} parent=11 // pred_region
          %300 = vsyncadd [#allocation8], 0
          %s302 = sshll.u32 %s5, 4
          %s303 = int_to_ptr.hbm [resolvable:$true] %s302
          %s304 = sshll.u32 [#allocation7], 4
          %s305 = int_to_ptr.vmem [resolvable:$true] %s304
          %307 = dma.hbm_to_vmem [thread:$0]  %s303, 16, %s305, [#allocation8]
        $region28: #{vae_forward.1} parent=11 // pred_fallthru
          _
        // Predicated region
        $region29: #{vae_forward.1} parent=11 // pred_check
          %p308 = pneg %p179
        $region30: #{vae_forward.1} parent=11 // pred_check_branch
          %310 = sbr.rel (%p308) target = $region32
        $region31: #{vae_forward.1} parent=11 // pred_region
          %312 = vsyncadd [#allocation8], 0
          %s313 = sshll.u32 %s6, 4
          %s314 = int_to_ptr.hbm [resolvable:$true] %s313
          %s315 = sshll.u32 [#allocation9], 4
          %s316 = int_to_ptr.vmem [resolvable:$true] %s315
          %321 = dma.hbm_to_vmem [thread:$0]  %s314, 4096, %s316, [#allocation8], 1024, 1024, 64
        $region32: #{vae_forward.1} parent=11 // pred_fallthru
          _
        // Predicated region
        $region33: #{vae_forward.1} parent=11 // pred_check
          %p322 = pneg %p200
        $region34: #{vae_forward.1} parent=11 // pred_check_branch
          %324 = sbr.rel (%p322) target = $region36
        $region35: #{vae_forward.1} parent=11 // pred_region
          %326 = vsyncadd [#allocation11], 0
          %s328 = sshll.u32 %s7, 4
          %s329 = int_to_ptr.hbm [resolvable:$true] %s328
          %s330 = sshll.u32 [#allocation10], 4
          %s331 = int_to_ptr.vmem [resolvable:$true] %s330
          %333 = dma.hbm_to_vmem [thread:$0]  %s329, 128, %s331, [#allocation11]
        $region36: #{vae_forward.1} parent=11 // pred_fallthru
          _
      $region12: #{vae_forward.1} parent=5 // pred_fallthru
        _
      %p334 = scmp.lt.s32.totalorder %s22, 2
      // Predicated region
      $region37: #{vae_forward.1} parent=5 // pred_check
        %p335 = pneg %p334
      $region38: #{vae_forward.1} parent=5 // pred_check_branch
        %337 = sbr.rel (%p335) target = $region40
      $region39: #{vae_forward.1} parent=5 // pred_region
        // Predicated region
        $region41: #{vae_forward.1} parent=39 // pred_check
          %p338 = pneg %p42
        $region42: #{vae_forward.1} parent=39 // pred_check_branch
          %340 = sbr.rel (%p338) target = $region44
        $region43: #{vae_forward.1} parent=39 // pred_region
          %p341 = scmp.lt.s32.totalorder %s22, 1
          %s342 = scalar_select %p341, %s22, 1
          %s343 = smul.addr %s342, 4
          %s344 = smul.addr %s343, 8
          %s345 = scalar_lea.vmem %s0, %s344
        $region44: #{vae_forward.1} parent=39 // pred_fallthru
          _
        // Predicated region
        $region45: #{vae_forward.1} parent=39 // pred_check
          %p346 = pneg %p68
        $region46: #{vae_forward.1} parent=39 // pred_check_branch
          %348 = sbr.rel (%p346) target = $region48
        $region47: #{vae_forward.1} parent=39 // pred_region
          %s349 = sand.u32 %s58, 1
          %s350 = scalar_lea.sflag [#allocation3], %s349
          %s351 = sand.u32 %s58, 1
          %s352 = scalar_lea.vmem [#allocation2], %s351
          %354 = vsyncadd %s350, 0
          %s355 = scalar_lea.hbm %s1, %s22
          %s357 = sshll.u32 %s355, 4
          %s358 = int_to_ptr.hbm [resolvable:$true] %s357
          %s359 = sshll.u32 %s352, 4
          %s360 = int_to_ptr.vmem [resolvable:$true] %s359
          %362 = dma.hbm_to_vmem [thread:$0]  %s358, 16, %s360, %s350
        $region48: #{vae_forward.1} parent=39 // pred_fallthru
          _
      $region40: #{vae_forward.1} parent=5 // pred_fallthru
        _
      %p363 = scmp.le.s32.totalorder 1, %s22
      %p364 = scmp.lt.s32.totalorder %s22, 3
      %p365 = pnand %p363, %p364
      %p366 = pneg %p365
      // Predicated region
      $region49: #{vae_forward.1} parent=5 // pred_check
        _
      $region50: #{vae_forward.1} parent=5 // pred_check_branch
        %368 = sbr.rel (%p365) target = $region52
      $region51: #{vae_forward.1} parent=5 // pred_region
        %s369 = ssub.s32 %s22, 1
        %s370 = sand.u32 %s61, 1
        %s371 = scalar_lea.sflag [#allocation3], %s370
        %s372 = sand.u32 %s61, 1
        %s373 = scalar_lea.vmem [#allocation2], %s372
        // Predicated region
        $region53: #{vae_forward.1} parent=51 // pred_check
          %p374 = pneg %p74
        $region54: #{vae_forward.1} parent=51 // pred_check_branch
          %376 = sbr.rel (%p374) target = $region56
        $region55: #{vae_forward.1} parent=51 // pred_region
          %378 = dma.done %s371, 16
        $region56: #{vae_forward.1} parent=51 // pred_fallthru
          _
        // Predicated region
        $region57: #{vae_forward.1} parent=51 // pred_check
          %p379 = pneg %p95
        $region58: #{vae_forward.1} parent=51 // pred_check_branch
          %381 = sbr.rel (%p379) target = $region60
        $region59: #{vae_forward.1} parent=51 // pred_region
          %383 = dma.done [#allocation5], 128
        $region60: #{vae_forward.1} parent=51 // pred_fallthru
          _
        // Predicated region
        $region61: #{vae_forward.1} parent=51 // pred_check
          %p384 = pneg %p137
        $region62: #{vae_forward.1} parent=51 // pred_check_branch
          %386 = sbr.rel (%p384) target = $region64
        $region63: #{vae_forward.1} parent=51 // pred_region
          %388 = dma.done [#allocation5], 49152
        $region64: #{vae_forward.1} parent=51 // pred_fallthru
          _
        // Predicated region
        $region65: #{vae_forward.1} parent=51 // pred_check
          %p389 = pneg %p158
        $region66: #{vae_forward.1} parent=51 // pred_check_branch
          %391 = sbr.rel (%p389) target = $region68
        $region67: #{vae_forward.1} parent=51 // pred_region
          %393 = dma.done [#allocation8], 16
        $region68: #{vae_forward.1} parent=51 // pred_fallthru
          _
        // Predicated region
        $region69: #{vae_forward.1} parent=51 // pred_check
          %p394 = pneg %p179
        $region70: #{vae_forward.1} parent=51 // pred_check_branch
          %396 = sbr.rel (%p394) target = $region72
        $region71: #{vae_forward.1} parent=51 // pred_region
          %398 = dma.done [#allocation8], 4096
        $region72: #{vae_forward.1} parent=51 // pred_fallthru
          _
        // Predicated region
        $region73: #{vae_forward.1} parent=51 // pred_check
          %p399 = pneg %p200
        $region74: #{vae_forward.1} parent=51 // pred_check_branch
          %401 = sbr.rel (%p399) target = $region76
        $region75: #{vae_forward.1} parent=51 // pred_region
          %403 = dma.done [#allocation11], 128
        $region76: #{vae_forward.1} parent=51 // pred_fallthru
          _
        %p404 = scmp.lt.s32.totalorder %s27, 1
        %s405 = scalar_select %p404, %s27, 1
        %s406 = smul.addr %s405, 4
        %s407 = smul.addr %s406, 8
        %s408 = scalar_lea.vmem %s0, %s407
        %p409 = pneg %p48
        %p410 = pneg %p45
        %s411 = sand.u32 %s61, 1
        %s412 = scalar_lea.sflag [#allocation3], %s411
        %s413 = sand.u32 %s61, 1
        %s414 = scalar_lea.vmem [#allocation2], %s413
        %p415 = pneg %p74
        %p416 = pneg %p71
        %p417 = pneg %p95
        %p418 = pneg %p92
        %p419 = pneg %p116
        %p420 = pneg %p113
        %p421 = pneg %p137
        %p422 = pneg %p134
        %p423 = pneg %p158
        %p424 = pneg %p155
        %p425 = pneg %p179
        %p426 = pneg %p176
        %p427 = pneg %p200
        %p428 = pneg %p197
        %p429 = pneg %p226
        %p430 = pneg %p223
        %p431 = scmp.lt.s32.totalorder %s27, 1
        %s432 = scalar_select %p431, %s27, 1
        %s433 = smul.addr %s432, 8
        %s434 = scalar_lea.vmem %s8, %s433
        %p435 = pneg %p252
        %p436 = pneg %p249
        %p437 = scmp.lt.s32.totalorder %s27, 1
        %s438 = scalar_select %p437, %s27, 1
        %s439 = scalar_lea.vmem %s9, %s438
        %p440 = scmp.lt.s32.totalorder %s27, 1
        %s441 = scalar_select %p440, %s27, 1
        %s442 = smul.addr %s441, 4
        %s443 = smul.addr %s442, 8
        %s444 = scalar_lea.vmem %s0, %s443
        %p445 = scmp.lt.s32.totalorder %s27, 1
        %s446 = scalar_select %p445, %s27, 1
        %s447 = smul.addr %s446, 8
        %s448 = scalar_lea.vmem %s8, %s447
        %p449 = scmp.lt.s32.totalorder %s27, 1
        %s450 = scalar_select %p449, %s27, 1
        %s451 = scalar_lea.vmem %s9, %s450
        %v452 = vld [vmem:[%s444] sm:$0xff]
        %v453 = vld [vmem:[%s444 + $0x8] sm:$0xff]
        %v454 = vld [vmem:[%s444 + $0x10] sm:$0xff]
        %v455 = vld [vmem:[%s444 + $0x18] sm:$0xff]
        %460 = vrot.lane.b32.xlu0 %v452, 127
        %v461 = vpop.permute.xlu0 %460
        %462 = vrot.lane.b32.xlu0 %v453, 127
        %v463 = vpop.permute.xlu0 %462
        %464 = vrot.lane.b32.xlu0 %v454, 127
        %v465 = vpop.permute.xlu0 %464
        %466 = vrot.lane.b32.xlu0 %v455, 127
        %v467 = vpop.permute.xlu0 %466
        %vm468 = vcmask 1039360
        %v469 = vsel %vm468, %v461, %v463
        %v470 = vsel %vm468, %v463, %v465
        %v471 = vsel %vm468, %v465, %v467
        %475 = vrot.lane.b32.xlu0 %v452, 126
        %v476 = vpop.permute.xlu0 %475
        %477 = vrot.lane.b32.xlu0 %v453, 126
        %v478 = vpop.permute.xlu0 %477
        %479 = vrot.lane.b32.xlu0 %v454, 126
        %v480 = vpop.permute.xlu0 %479
        %481 = vrot.lane.b32.xlu0 %v455, 126
        %v482 = vpop.permute.xlu0 %481
        %vm483 = vcmask 1031168
        %v484 = vsel %vm483, %v476, %v478
        %v485 = vsel %vm483, %v478, %v480
        %v486 = vsel %vm483, %v480, %v482
        %490 = vrot.lane.b32.xlu0 %v452, 110
        %v491 = vpop.permute.xlu0 %490
        %492 = vrot.lane.b32.xlu0 %v453, 110
        %v493 = vpop.permute.xlu0 %492
        %494 = vrot.lane.b32.xlu0 %v454, 110
        %v495 = vpop.permute.xlu0 %494
        %496 = vrot.lane.b32.xlu0 %v455, 110
        %v497 = vpop.permute.xlu0 %496
        %vm498 = vcmask 900096
        %v499 = vsel %vm498, %v491, %v493
        %v500 = vsel %vm498, %v493, %v495
        %v501 = vsel %vm498, %v495, %v497
        %505 = vrot.lane.b32.xlu0 %v452, 109
        %v506 = vpop.permute.xlu0 %505
        %507 = vrot.lane.b32.xlu0 %v453, 109
        %v508 = vpop.permute.xlu0 %507
        %509 = vrot.lane.b32.xlu0 %v454, 109
        %v510 = vpop.permute.xlu0 %509
        %511 = vrot.lane.b32.xlu0 %v455, 109
        %v512 = vpop.permute.xlu0 %511
        %vm513 = vcmask 891904
        %v514 = vsel %vm513, %v506, %v508
        %v515 = vsel %vm513, %v508, %v510
        %v516 = vsel %vm513, %v510, %v512
        %520 = vrot.lane.b32.xlu0 %v452, 108
        %v521 = vpop.permute.xlu0 %520
        %522 = vrot.lane.b32.xlu0 %v453, 108
        %v523 = vpop.permute.xlu0 %522
        %524 = vrot.lane.b32.xlu0 %v454, 108
        %v525 = vpop.permute.xlu0 %524
        %526 = vrot.lane.b32.xlu0 %v455, 108
        %v527 = vpop.permute.xlu0 %526
        %vm528 = vcmask 883712
        %v529 = vsel %vm528, %v521, %v523
        %v530 = vsel %vm528, %v523, %v525
        %v531 = vsel %vm528, %v525, %v527
        %535 = vrot.lane.b32.xlu0 %v452, 92
        %v536 = vpop.permute.xlu0 %535
        %537 = vrot.lane.b32.xlu0 %v453, 92
        %v538 = vpop.permute.xlu0 %537
        %539 = vrot.lane.b32.xlu0 %v454, 92
        %v540 = vpop.permute.xlu0 %539
        %541 = vrot.lane.b32.xlu0 %v455, 92
        %v542 = vpop.permute.xlu0 %541
        %vm543 = vcmask 752640
        %v544 = vsel %vm543, %v536, %v538
        %v545 = vsel %vm543, %v538, %v540
        %v546 = vsel %vm543, %v540, %v542
        %550 = vrot.lane.b32.xlu0 %v452, 91
        %v551 = vpop.permute.xlu0 %550
        %552 = vrot.lane.b32.xlu0 %v453, 91
        %v553 = vpop.permute.xlu0 %552
        %554 = vrot.lane.b32.xlu0 %v454, 91
        %v555 = vpop.permute.xlu0 %554
        %556 = vrot.lane.b32.xlu0 %v455, 91
        %v557 = vpop.permute.xlu0 %556
        %vm558 = vcmask 744448
        %v559 = vsel %vm558, %v551, %v553
        %v560 = vsel %vm558, %v553, %v555
        %v561 = vsel %vm558, %v555, %v557
        %565 = vrot.lane.b32.xlu0 %v452, 90
        %v566 = vpop.permute.xlu0 %565
        %567 = vrot.lane.b32.xlu0 %v453, 90
        %v568 = vpop.permute.xlu0 %567
        %569 = vrot.lane.b32.xlu0 %v454, 90
        %v570 = vpop.permute.xlu0 %569
        %571 = vrot.lane.b32.xlu0 %v455, 90
        %v572 = vpop.permute.xlu0 %571
        %vm573 = vcmask 736256
        %v574 = vsel %vm573, %v566, %v568
        %v575 = vsel %vm573, %v568, %v570
        %v576 = vsel %vm573, %v570, %v572
        %v580 = vld [vmem:[#allocation4] sm:$0xff]
        %v581 = vld [vmem:[%s3] sm:$0xff]
        %583 = vset.pattern.permute.xlu0 0
        %584 = vperm.xlu0 %583, %v581
        %v585 = vpop.permute.xlu0 %584
        %vm587 = vcmask 588800
        %v589 = vsel %vm587, %v580, 0
        %591 = vmatpush.msra.mxu0 0.0
        %592 = vmatpush.msra.mxu0 0.0
        %593 = vmatpush.msra.mxu0 0.0
        %594 = vmatpush.msra.mxu0 0.0
        %595 = vmatpush.msra.mxu0 0.0
        %596 = vmatpush.msra.mxu0 0.0
        %597 = vmatpush.msra.mxu0 0.0
        %598 = vmatpush.msra.mxu0 %v574
        %599 = vmatpush.msra.mxu0 %v559
        %600 = vmatpush.msra.mxu0 %v544
        %601 = vmatpush.msra.mxu0 %v529
        %602 = vmatpush.msra.mxu0 %v514
        %603 = vmatpush.msra.mxu0 %v499
        %604 = vmatpush.msra.mxu0 %v484
        %605 = vmatpush.msra.mxu0 %v469
        %606 = vmatpush.msra.mxu0 %v452
        %607 = vmatmul.f32.gmra.mxu0 %v589
        %v608 = vpop.f32.mrf.mxu0
        %v609 = vadd.f32 %v585, %v608
        %610 = vdwg.mxu0
        %611 = vmatpush.msra.mxu0 0.0
        %612 = vmatpush.msra.mxu0 0.0
        %613 = vmatpush.msra.mxu0 0.0
        %614 = vmatpush.msra.mxu0 0.0
        %615 = vmatpush.msra.mxu0 0.0
        %616 = vmatpush.msra.mxu0 0.0
        %617 = vmatpush.msra.mxu0 0.0
        %618 = vmatpush.msra.mxu0 %v575
        %619 = vmatpush.msra.mxu0 %v560
        %620 = vmatpush.msra.mxu0 %v545
        %621 = vmatpush.msra.mxu0 %v530
        %622 = vmatpush.msra.mxu0 %v515
        %623 = vmatpush.msra.mxu0 %v500
        %624 = vmatpush.msra.mxu0 %v485
        %625 = vmatpush.msra.mxu0 %v470
        %626 = vmatpush.msra.mxu0 %v453
        %627 = vmatmul.f32.gmra.mxu0 %v589
        %v628 = vpop.f32.mrf.mxu0
        %v629 = vadd.f32 %v585, %v628
        %630 = vdwg.mxu0
        %631 = vmatpush.msra.mxu0 0.0
        %632 = vmatpush.msra.mxu0 0.0
        %633 = vmatpush.msra.mxu0 0.0
        %634 = vmatpush.msra.mxu0 0.0
        %635 = vmatpush.msra.mxu0 0.0
        %636 = vmatpush.msra.mxu0 0.0
        %637 = vmatpush.msra.mxu0 0.0
        %638 = vmatpush.msra.mxu0 %v576
        %639 = vmatpush.msra.mxu0 %v561
        %640 = vmatpush.msra.mxu0 %v546
        %641 = vmatpush.msra.mxu0 %v531
        %642 = vmatpush.msra.mxu0 %v516
        %643 = vmatpush.msra.mxu0 %v501
        %644 = vmatpush.msra.mxu0 %v486
        %645 = vmatpush.msra.mxu0 %v471
        %646 = vmatpush.msra.mxu0 %v454
        %647 = vmatmul.f32.gmra.mxu0 %v589
        %v648 = vpop.f32.mrf.mxu0
        %v649 = vadd.f32 %v585, %v648
        %650 = vdwg.mxu0
        %v651 = vmax.f32 %v609, 0.0
        %v652 = vmax.f32 %v629, 0.0
        %v653 = vmax.f32 %v649, 0.0
        %v657 = vrot.slane %v651, 1
        %v658 = vrot.slane %v652, 1
        %v659 = vrot.slane %v653, 1
        %v663 = vrot.slane %v651, 2
        %v664 = vrot.slane %v652, 2
        %v665 = vrot.slane %v653, 2
        %v669 = vrot.slane %v651, 3
        %v670 = vrot.slane %v652, 3
        %v671 = vrot.slane %v653, 3
        %v675 = vrot.slane %v651, 4
        %v676 = vrot.slane %v652, 4
        %v677 = vrot.slane %v653, 4
        %v681 = vrot.slane %v651, 5
        %v682 = vrot.slane %v652, 5
        %v683 = vrot.slane %v653, 5
        %v687 = vrot.slane %v651, 6
        %v688 = vrot.slane %v652, 6
        %v689 = vrot.slane %v653, 6
        %v693 = vrot.slane %v651, 7
        %v694 = vrot.slane %v652, 7
        %v695 = vrot.slane %v653, 7
        %v699 = vld [vmem:[#allocation6] sm:$0xff]
        %v700 = vld [vmem:[#allocation6 + $0x8] sm:$0xff]
        %v701 = vld [vmem:[#allocation6 + $0x10] sm:$0xff]
        %v702 = vld [vmem:[#allocation6 + $0x18] sm:$0xff]
        %v703 = vld [vmem:[#allocation6 + $0x20] sm:$0xff]
        %v704 = vld [vmem:[#allocation6 + $0x28] sm:$0xff]
        %v705 = vld [vmem:[#allocation6 + $0x30] sm:$0xff]
        %v706 = vld [vmem:[#allocation6 + $0x38] sm:$0xff]
        %v707 = vld [vmem:[#allocation6 + $0x40] sm:$0xff]
        %v708 = vld [vmem:[#allocation6 + $0x48] sm:$0xff]
        %v709 = vld [vmem:[#allocation6 + $0x50] sm:$0xff]
        %v710 = vld [vmem:[#allocation6 + $0x58] sm:$0xff]
        %v711 = vld [vmem:[#allocation6 + $0x60] sm:$0xff]
        %v712 = vld [vmem:[#allocation6 + $0x68] sm:$0xff]
        %v713 = vld [vmem:[#allocation6 + $0x70] sm:$0xff]
        %v714 = vld [vmem:[#allocation6 + $0x78] sm:$0xff]
        %v715 = vld [vmem:[#allocation6 + $0x80] sm:$0xff]
        %v716 = vld [vmem:[#allocation6 + $0x88] sm:$0xff]
        %v717 = vld [vmem:[#allocation6 + $0x90] sm:$0xff]
        %v718 = vld [vmem:[#allocation6 + $0x98] sm:$0xff]
        %v719 = vld [vmem:[#allocation6 + $0xa0] sm:$0xff]
        %v720 = vld [vmem:[#allocation6 + $0xa8] sm:$0xff]
        %v721 = vld [vmem:[#allocation6 + $0xb0] sm:$0xff]
        %v722 = vld [vmem:[#allocation6 + $0xb8] sm:$0xff]
        %v723 = vld [vmem:[#allocation6 + $0xc0] sm:$0xff]
        %v724 = vld [vmem:[#allocation6 + $0xc8] sm:$0xff]
        %v725 = vld [vmem:[#allocation6 + $0xd0] sm:$0xff]
        %v726 = vld [vmem:[#allocation6 + $0xd8] sm:$0xff]
        %v727 = vld [vmem:[#allocation6 + $0xe0] sm:$0xff]
        %v728 = vld [vmem:[#allocation6 + $0xe8] sm:$0xff]
        %v729 = vld [vmem:[#allocation6 + $0xf0] sm:$0xff]
        %v730 = vld [vmem:[#allocation6 + $0xf8] sm:$0xff]
        %v731 = vld [vmem:[#allocation6 + $0x100] sm:$0xff]
        %v732 = vld [vmem:[#allocation6 + $0x108] sm:$0xff]
        %v733 = vld [vmem:[#allocation6 + $0x110] sm:$0xff]
        %v734 = vld [vmem:[#allocation6 + $0x118] sm:$0xff]
        %v735 = vld [vmem:[#allocation6 + $0x120] sm:$0xff]
        %v736 = vld [vmem:[#allocation6 + $0x128] sm:$0xff]
        %v737 = vld [vmem:[#allocation6 + $0x130] sm:$0xff]
        %v738 = vld [vmem:[#allocation6 + $0x138] sm:$0xff]
        %v739 = vld [vmem:[#allocation6 + $0x140] sm:$0xff]
        %v740 = vld [vmem:[#allocation6 + $0x148] sm:$0xff]
        %v741 = vld [vmem:[#allocation6 + $0x150] sm:$0xff]
        %v742 = vld [vmem:[#allocation6 + $0x158] sm:$0xff]
        %v743 = vld [vmem:[#allocation6 + $0x160] sm:$0xff]
        %v744 = vld [vmem:[#allocation6 + $0x168] sm:$0xff]
        %v745 = vld [vmem:[#allocation6 + $0x170] sm:$0xff]
        %v746 = vld [vmem:[#allocation6 + $0x178] sm:$0xff]
        %v747 = vld [vmem:[#allocation6 + $0x180] sm:$0xff]
        %v748 = vld [vmem:[#allocation6 + $0x188] sm:$0xff]
        %v749 = vld [vmem:[#allocation6 + $0x190] sm:$0xff]
        %v750 = vld [vmem:[#allocation6 + $0x198] sm:$0xff]
        %v751 = vld [vmem:[#allocation6 + $0x1a0] sm:$0xff]
        %v752 = vld [vmem:[#allocation6 + $0x1a8] sm:$0xff]
        %v753 = vld [vmem:[#allocation6 + $0x1b0] sm:$0xff]
        %v754 = vld [vmem:[#allocation6 + $0x1b8] sm:$0xff]
        %v755 = vld [vmem:[#allocation6 + $0x1c0] sm:$0xff]
        %v756 = vld [vmem:[#allocation6 + $0x1c8] sm:$0xff]
        %v757 = vld [vmem:[#allocation6 + $0x1d0] sm:$0xff]
        %v758 = vld [vmem:[#allocation6 + $0x1d8] sm:$0xff]
        %v759 = vld [vmem:[#allocation6 + $0x1e0] sm:$0xff]
        %v760 = vld [vmem:[#allocation6 + $0x1e8] sm:$0xff]
        %v761 = vld [vmem:[#allocation6 + $0x1f0] sm:$0xff]
        %v762 = vld [vmem:[#allocation6 + $0x1f8] sm:$0xff]
        %v763 = vld [vmem:[#allocation6 + $0x200] sm:$0xff]
        %v764 = vld [vmem:[#allocation6 + $0x208] sm:$0xff]
        %v765 = vld [vmem:[#allocation6 + $0x210] sm:$0xff]
        %v766 = vld [vmem:[#allocation6 + $0x218] sm:$0xff]
        %v767 = vld [vmem:[#allocation6 + $0x220] sm:$0xff]
        %v768 = vld [vmem:[#allocation6 + $0x228] sm:$0xff]
        %v769 = vld [vmem:[#allocation6 + $0x230] sm:$0xff]
        %v770 = vld [vmem:[#allocation6 + $0x238] sm:$0xff]
        %v771 = vld [vmem:[#allocation6 + $0x240] sm:$0xff]
        %v772 = vld [vmem:[#allocation6 + $0x248] sm:$0xff]
        %v773 = vld [vmem:[#allocation6 + $0x250] sm:$0xff]
        %v774 = vld [vmem:[#allocation6 + $0x258] sm:$0xff]
        %v775 = vld [vmem:[#allocation6 + $0x260] sm:$0xff]
        %v776 = vld [vmem:[#allocation6 + $0x268] sm:$0xff]
        %v777 = vld [vmem:[#allocation6 + $0x270] sm:$0xff]
        %v778 = vld [vmem:[#allocation6 + $0x278] sm:$0xff]
        %v779 = vld [vmem:[#allocation6 + $0x280] sm:$0xff]
        %v780 = vld [vmem:[#allocation6 + $0x288] sm:$0xff]
        %v781 = vld [vmem:[#allocation6 + $0x290] sm:$0xff]
        %v782 = vld [vmem:[#allocation6 + $0x298] sm:$0xff]
        %v783 = vld [vmem:[#allocation6 + $0x2a0] sm:$0xff]
        %v784 = vld [vmem:[#allocation6 + $0x2a8] sm:$0xff]
        %v785 = vld [vmem:[#allocation6 + $0x2b0] sm:$0xff]
        %v786 = vld [vmem:[#allocation6 + $0x2b8] sm:$0xff]
        %v787 = vld [vmem:[#allocation6 + $0x2c0] sm:$0xff]
        %v788 = vld [vmem:[#allocation6 + $0x2c8] sm:$0xff]
        %v789 = vld [vmem:[#allocation6 + $0x2d0] sm:$0xff]
        %v790 = vld [vmem:[#allocation6 + $0x2d8] sm:$0xff]
        %v791 = vld [vmem:[#allocation6 + $0x2e0] sm:$0xff]
        %v792 = vld [vmem:[#allocation6 + $0x2e8] sm:$0xff]
        %v793 = vld [vmem:[#allocation6 + $0x2f0] sm:$0xff]
        %v794 = vld [vmem:[#allocation6 + $0x2f8] sm:$0xff]
        %v795 = vld [vmem:[#allocation6 + $0x300] sm:$0xff]
        %v796 = vld [vmem:[#allocation6 + $0x308] sm:$0xff]
        %v797 = vld [vmem:[#allocation6 + $0x310] sm:$0xff]
        %v798 = vld [vmem:[#allocation6 + $0x318] sm:$0xff]
        %v799 = vld [vmem:[#allocation6 + $0x320] sm:$0xff]
        %v800 = vld [vmem:[#allocation6 + $0x328] sm:$0xff]
        %v801 = vld [vmem:[#allocation6 + $0x330] sm:$0xff]
        %v802 = vld [vmem:[#allocation6 + $0x338] sm:$0xff]
        %v803 = vld [vmem:[#allocation6 + $0x340] sm:$0xff]
        %v804 = vld [vmem:[#allocation6 + $0x348] sm:$0xff]
        %v805 = vld [vmem:[#allocation6 + $0x350] sm:$0xff]
        %v806 = vld [vmem:[#allocation6 + $0x358] sm:$0xff]
        %v807 = vld [vmem:[#allocation6 + $0x360] sm:$0xff]
        %v808 = vld [vmem:[#allocation6 + $0x368] sm:$0xff]
        %v809 = vld [vmem:[#allocation6 + $0x370] sm:$0xff]
        %v810 = vld [vmem:[#allocation6 + $0x378] sm:$0xff]
        %v811 = vld [vmem:[#allocation6 + $0x380] sm:$0xff]
        %v812 = vld [vmem:[#allocation6 + $0x388] sm:$0xff]
        %v813 = vld [vmem:[#allocation6 + $0x390] sm:$0xff]
        %v814 = vld [vmem:[#allocation6 + $0x398] sm:$0xff]
        %v815 = vld [vmem:[#allocation6 + $0x3a0] sm:$0xff]
        %v816 = vld [vmem:[#allocation6 + $0x3a8] sm:$0xff]
        %v817 = vld [vmem:[#allocation6 + $0x3b0] sm:$0xff]
        %v818 = vld [vmem:[#allocation6 + $0x3b8] sm:$0xff]
        %v819 = vld [vmem:[#allocation6 + $0x3c0] sm:$0xff]
        %v820 = vld [vmem:[#allocation6 + $0x3c8] sm:$0xff]
        %v821 = vld [vmem:[#allocation6 + $0x3d0] sm:$0xff]
        %v822 = vld [vmem:[#allocation6 + $0x3d8] sm:$0xff]
        %v823 = vld [vmem:[#allocation6 + $0x3e0] sm:$0xff]
        %v824 = vld [vmem:[#allocation6 + $0x3e8] sm:$0xff]
        %v825 = vld [vmem:[#allocation6 + $0x3f0] sm:$0xff]
        %v826 = vld [vmem:[#allocation6 + $0x3f8] sm:$0xff]
        %v827 = vld [vmem:[#allocation6 + $0x400] sm:$0xff]
        %v828 = vld [vmem:[#allocation6 + $0x408] sm:$0xff]
        %v829 = vld [vmem:[#allocation6 + $0x410] sm:$0xff]
        %v830 = vld [vmem:[#allocation6 + $0x418] sm:$0xff]
        %v831 = vld [vmem:[#allocation6 + $0x420] sm:$0xff]
        %v832 = vld [vmem:[#allocation6 + $0x428] sm:$0xff]
        %v833 = vld [vmem:[#allocation6 + $0x430] sm:$0xff]
        %v834 = vld [vmem:[#allocation6 + $0x438] sm:$0xff]
        %v835 = vld [vmem:[#allocation6 + $0x440] sm:$0xff]
        %v836 = vld [vmem:[#allocation6 + $0x448] sm:$0xff]
        %v837 = vld [vmem:[#allocation6 + $0x450] sm:$0xff]
        %v838 = vld [vmem:[#allocation6 + $0x458] sm:$0xff]
        %v839 = vld [vmem:[#allocation6 + $0x460] sm:$0xff]
        %v840 = vld [vmem:[#allocation6 + $0x468] sm:$0xff]
        %v841 = vld [vmem:[#allocation6 + $0x470] sm:$0xff]
        %v842 = vld [vmem:[#allocation6 + $0x478] sm:$0xff]
        %v843 = vld [vmem:[#allocation6 + $0x480] sm:$0xff]
        %v844 = vld [vmem:[#allocation6 + $0x488] sm:$0xff]
        %v845 = vld [vmem:[#allocation6 + $0x490] sm:$0xff]
        %v846 = vld [vmem:[#allocation6 + $0x498] sm:$0xff]
        %v847 = vld [vmem:[#allocation6 + $0x4a0] sm:$0xff]
        %v848 = vld [vmem:[#allocation6 + $0x4a8] sm:$0xff]
        %v849 = vld [vmem:[#allocation6 + $0x4b0] sm:$0xff]
        %v850 = vld [vmem:[#allocation6 + $0x4b8] sm:$0xff]
        %v851 = vld [vmem:[#allocation6 + $0x4c0] sm:$0xff]
        %v852 = vld [vmem:[#allocation6 + $0x4c8] sm:$0xff]
        %v853 = vld [vmem:[#allocation6 + $0x4d0] sm:$0xff]
        %v854 = vld [vmem:[#allocation6 + $0x4d8] sm:$0xff]
        %v855 = vld [vmem:[#allocation6 + $0x4e0] sm:$0xff]
        %v856 = vld [vmem:[#allocation6 + $0x4e8] sm:$0xff]
        %v857 = vld [vmem:[#allocation6 + $0x4f0] sm:$0xff]
        %v858 = vld [vmem:[#allocation6 + $0x4f8] sm:$0xff]
        %v859 = vld [vmem:[#allocation6 + $0x500] sm:$0xff]
        %v860 = vld [vmem:[#allocation6 + $0x508] sm:$0xff]
        %v861 = vld [vmem:[#allocation6 + $0x510] sm:$0xff]
        %v862 = vld [vmem:[#allocation6 + $0x518] sm:$0xff]
        %v863 = vld [vmem:[#allocation6 + $0x520] sm:$0xff]
        %v864 = vld [vmem:[#allocation6 + $0x528] sm:$0xff]
        %v865 = vld [vmem:[#allocation6 + $0x530] sm:$0xff]
        %v866 = vld [vmem:[#allocation6 + $0x538] sm:$0xff]
        %v867 = vld [vmem:[#allocation6 + $0x540] sm:$0xff]
        %v868 = vld [vmem:[#allocation6 + $0x548] sm:$0xff]
        %v869 = vld [vmem:[#allocation6 + $0x550] sm:$0xff]
        %v870 = vld [vmem:[#allocation6 + $0x558] sm:$0xff]
        %v871 = vld [vmem:[#allocation6 + $0x560] sm:$0xff]
        %v872 = vld [vmem:[#allocation6 + $0x568] sm:$0xff]
        %v873 = vld [vmem:[#allocation6 + $0x570] sm:$0xff]
        %v874 = vld [vmem:[#allocation6 + $0x578] sm:$0xff]
        %v875 = vld [vmem:[#allocation6 + $0x580] sm:$0xff]
        %v876 = vld [vmem:[#allocation6 + $0x588] sm:$0xff]
        %v877 = vld [vmem:[#allocation6 + $0x590] sm:$0xff]
        %v878 = vld [vmem:[#allocation6 + $0x598] sm:$0xff]
        %v879 = vld [vmem:[#allocation6 + $0x5a0] sm:$0xff]
        %v880 = vld [vmem:[#allocation6 + $0x5a8] sm:$0xff]
        %v881 = vld [vmem:[#allocation6 + $0x5b0] sm:$0xff]
        %v882 = vld [vmem:[#allocation6 + $0x5b8] sm:$0xff]
        %v883 = vld [vmem:[#allocation6 + $0x5c0] sm:$0xff]
        %v884 = vld [vmem:[#allocation6 + $0x5c8] sm:$0xff]
        %v885 = vld [vmem:[#allocation6 + $0x5d0] sm:$0xff]
        %v886 = vld [vmem:[#allocation6 + $0x5d8] sm:$0xff]
        %v887 = vld [vmem:[#allocation6 + $0x5e0] sm:$0xff]
        %v888 = vld [vmem:[#allocation6 + $0x5e8] sm:$0xff]
        %v889 = vld [vmem:[#allocation6 + $0x5f0] sm:$0xff]
        %v890 = vld [vmem:[#allocation6 + $0x5f8] sm:$0xff]
        %v891 = vld [vmem:[#allocation6 + $0x600] sm:$0xff]
        %v892 = vld [vmem:[#allocation6 + $0x608] sm:$0xff]
        %v893 = vld [vmem:[#allocation6 + $0x610] sm:$0xff]
        %v894 = vld [vmem:[#allocation6 + $0x618] sm:$0xff]
        %v895 = vld [vmem:[#allocation6 + $0x620] sm:$0xff]
        %v896 = vld [vmem:[#allocation6 + $0x628] sm:$0xff]
        %v897 = vld [vmem:[#allocation6 + $0x630] sm:$0xff]
        %v898 = vld [vmem:[#allocation6 + $0x638] sm:$0xff]
        %v899 = vld [vmem:[#allocation6 + $0x640] sm:$0xff]
        %v900 = vld [vmem:[#allocation6 + $0x648] sm:$0xff]
        %v901 = vld [vmem:[#allocation6 + $0x650] sm:$0xff]
        %v902 = vld [vmem:[#allocation6 + $0x658] sm:$0xff]
        %v903 = vld [vmem:[#allocation6 + $0x660] sm:$0xff]
        %v904 = vld [vmem:[#allocation6 + $0x668] sm:$0xff]
        %v905 = vld [vmem:[#allocation6 + $0x670] sm:$0xff]
        %v906 = vld [vmem:[#allocation6 + $0x678] sm:$0xff]
        %v907 = vld [vmem:[#allocation6 + $0x680] sm:$0xff]
        %v908 = vld [vmem:[#allocation6 + $0x688] sm:$0xff]
        %v909 = vld [vmem:[#allocation6 + $0x690] sm:$0xff]
        %v910 = vld [vmem:[#allocation6 + $0x698] sm:$0xff]
        %v911 = vld [vmem:[#allocation6 + $0x6a0] sm:$0xff]
        %v912 = vld [vmem:[#allocation6 + $0x6a8] sm:$0xff]
        %v913 = vld [vmem:[#allocation6 + $0x6b0] sm:$0xff]
        %v914 = vld [vmem:[#allocation6 + $0x6b8] sm:$0xff]
        %v915 = vld [vmem:[#allocation6 + $0x6c0] sm:$0xff]
        %v916 = vld [vmem:[#allocation6 + $0x6c8] sm:$0xff]
        %v917 = vld [vmem:[#allocation6 + $0x6d0] sm:$0xff]
        %v918 = vld [vmem:[#allocation6 + $0x6d8] sm:$0xff]
        %v919 = vld [vmem:[#allocation6 + $0x6e0] sm:$0xff]
        %v920 = vld [vmem:[#allocation6 + $0x6e8] sm:$0xff]
        %v921 = vld [vmem:[#allocation6 + $0x6f0] sm:$0xff]
        %v922 = vld [vmem:[#allocation6 + $0x6f8] sm:$0xff]
        %v923 = vld [vmem:[#allocation6 + $0x700] sm:$0xff]
        %v924 = vld [vmem:[#allocation6 + $0x708] sm:$0xff]
        %v925 = vld [vmem:[#allocation6 + $0x710] sm:$0xff]
        %v926 = vld [vmem:[#allocation6 + $0x718] sm:$0xff]
        %v927 = vld [vmem:[#allocation6 + $0x720] sm:$0xff]
        %v928 = vld [vmem:[#allocation6 + $0x728] sm:$0xff]
        %v929 = vld [vmem:[#allocation6 + $0x730] sm:$0xff]
        %v930 = vld [vmem:[#allocation6 + $0x738] sm:$0xff]
        %v931 = vld [vmem:[#allocation6 + $0x740] sm:$0xff]
        %v932 = vld [vmem:[#allocation6 + $0x748] sm:$0xff]
        %v933 = vld [vmem:[#allocation6 + $0x750] sm:$0xff]
        %v934 = vld [vmem:[#allocation6 + $0x758] sm:$0xff]
        %v935 = vld [vmem:[#allocation6 + $0x760] sm:$0xff]
        %v936 = vld [vmem:[#allocation6 + $0x768] sm:$0xff]
        %v937 = vld [vmem:[#allocation6 + $0x770] sm:$0xff]
        %v938 = vld [vmem:[#allocation6 + $0x778] sm:$0xff]
        %v939 = vld [vmem:[#allocation6 + $0x780] sm:$0xff]
        %v940 = vld [vmem:[#allocation6 + $0x788] sm:$0xff]
        %v941 = vld [vmem:[#allocation6 + $0x790] sm:$0xff]
        %v942 = vld [vmem:[#allocation6 + $0x798] sm:$0xff]
        %v943 = vld [vmem:[#allocation6 + $0x7a0] sm:$0xff]
        %v944 = vld [vmem:[#allocation6 + $0x7a8] sm:$0xff]
        %v945 = vld [vmem:[#allocation6 + $0x7b0] sm:$0xff]
        %v946 = vld [vmem:[#allocation6 + $0x7b8] sm:$0xff]
        %v947 = vld [vmem:[#allocation6 + $0x7c0] sm:$0xff]
        %v948 = vld [vmem:[#allocation6 + $0x7c8] sm:$0xff]
        %v949 = vld [vmem:[#allocation6 + $0x7d0] sm:$0xff]
        %v950 = vld [vmem:[#allocation6 + $0x7d8] sm:$0xff]
        %v951 = vld [vmem:[#allocation6 + $0x7e0] sm:$0xff]
        %v952 = vld [vmem:[#allocation6 + $0x7e8] sm:$0xff]
        %v953 = vld [vmem:[#allocation6 + $0x7f0] sm:$0xff]
        %v954 = vld [vmem:[#allocation6 + $0x7f8] sm:$0xff]
        %v955 = vld [vmem:[#allocation6 + $0x800] sm:$0xff]
        %v956 = vld [vmem:[#allocation6 + $0x808] sm:$0xff]
        %v957 = vld [vmem:[#allocation6 + $0x810] sm:$0xff]
        %v958 = vld [vmem:[#allocation6 + $0x818] sm:$0xff]
        %v959 = vld [vmem:[#allocation6 + $0x820] sm:$0xff]
        %v960 = vld [vmem:[#allocation6 + $0x828] sm:$0xff]
        %v961 = vld [vmem:[#allocation6 + $0x830] sm:$0xff]
        %v962 = vld [vmem:[#allocation6 + $0x838] sm:$0xff]
        %v963 = vld [vmem:[#allocation6 + $0x840] sm:$0xff]
        %v964 = vld [vmem:[#allocation6 + $0x848] sm:$0xff]
        %v965 = vld [vmem:[#allocation6 + $0x850] sm:$0xff]
        %v966 = vld [vmem:[#allocation6 + $0x858] sm:$0xff]
        %v967 = vld [vmem:[#allocation6 + $0x860] sm:$0xff]
        %v968 = vld [vmem:[#allocation6 + $0x868] sm:$0xff]
        %v969 = vld [vmem:[#allocation6 + $0x870] sm:$0xff]
        %v970 = vld [vmem:[#allocation6 + $0x878] sm:$0xff]
        %v971 = vld [vmem:[#allocation6 + $0x880] sm:$0xff]
        %v972 = vld [vmem:[#allocation6 + $0x888] sm:$0xff]
        %v973 = vld [vmem:[#allocation6 + $0x890] sm:$0xff]
        %v974 = vld [vmem:[#allocation6 + $0x898] sm:$0xff]
        %v975 = vld [vmem:[#allocation6 + $0x8a0] sm:$0xff]
        %v976 = vld [vmem:[#allocation6 + $0x8a8] sm:$0xff]
        %v977 = vld [vmem:[#allocation6 + $0x8b0] sm:$0xff]
        %v978 = vld [vmem:[#allocation6 + $0x8b8] sm:$0xff]
        %v979 = vld [vmem:[#allocation6 + $0x8c0] sm:$0xff]
        %v980 = vld [vmem:[#allocation6 + $0x8c8] sm:$0xff]
        %v981 = vld [vmem:[#allocation6 + $0x8d0] sm:$0xff]
        %v982 = vld [vmem:[#allocation6 + $0x8d8] sm:$0xff]
        %v983 = vld [vmem:[#allocation6 + $0x8e0] sm:$0xff]
        %v984 = vld [vmem:[#allocation6 + $0x8e8] sm:$0xff]
        %v985 = vld [vmem:[#allocation6 + $0x8f0] sm:$0xff]
        %v986 = vld [vmem:[#allocation6 + $0x8f8] sm:$0xff]
        %v987 = vld [vmem:[#allocation6 + $0x900] sm:$0xff]
        %v988 = vld [vmem:[#allocation6 + $0x908] sm:$0xff]
        %v989 = vld [vmem:[#allocation6 + $0x910] sm:$0xff]
        %v990 = vld [vmem:[#allocation6 + $0x918] sm:$0xff]
        %v991 = vld [vmem:[#allocation6 + $0x920] sm:$0xff]
        %v992 = vld [vmem:[#allocation6 + $0x928] sm:$0xff]
        %v993 = vld [vmem:[#allocation6 + $0x930] sm:$0xff]
        %v994 = vld [vmem:[#allocation6 + $0x938] sm:$0xff]
        %v995 = vld [vmem:[#allocation6 + $0x940] sm:$0xff]
        %v996 = vld [vmem:[#allocation6 + $0x948] sm:$0xff]
        %v997 = vld [vmem:[#allocation6 + $0x950] sm:$0xff]
        %v998 = vld [vmem:[#allocation6 + $0x958] sm:$0xff]
        %v999 = vld [vmem:[#allocation6 + $0x960] sm:$0xff]
        %v1000 = vld [vmem:[#allocation6 + $0x968] sm:$0xff]
        %v1001 = vld [vmem:[#allocation6 + $0x970] sm:$0xff]
        %v1002 = vld [vmem:[#allocation6 + $0x978] sm:$0xff]
        %v1003 = vld [vmem:[#allocation6 + $0x980] sm:$0xff]
        %v1004 = vld [vmem:[#allocation6 + $0x988] sm:$0xff]
        %v1005 = vld [vmem:[#allocation6 + $0x990] sm:$0xff]
        %v1006 = vld [vmem:[#allocation6 + $0x998] sm:$0xff]
        %v1007 = vld [vmem:[#allocation6 + $0x9a0] sm:$0xff]
        %v1008 = vld [vmem:[#allocation6 + $0x9a8] sm:$0xff]
        %v1009 = vld [vmem:[#allocation6 + $0x9b0] sm:$0xff]
        %v1010 = vld [vmem:[#allocation6 + $0x9b8] sm:$0xff]
        %v1011 = vld [vmem:[#allocation6 + $0x9c0] sm:$0xff]
        %v1012 = vld [vmem:[#allocation6 + $0x9c8] sm:$0xff]
        %v1013 = vld [vmem:[#allocation6 + $0x9d0] sm:$0xff]
        %v1014 = vld [vmem:[#allocation6 + $0x9d8] sm:$0xff]
        %v1015 = vld [vmem:[#allocation6 + $0x9e0] sm:$0xff]
        %v1016 = vld [vmem:[#allocation6 + $0x9e8] sm:$0xff]
        %v1017 = vld [vmem:[#allocation6 + $0x9f0] sm:$0xff]
        %v1018 = vld [vmem:[#allocation6 + $0x9f8] sm:$0xff]
        %v1019 = vld [vmem:[#allocation6 + $0xa00] sm:$0xff]
        %v1020 = vld [vmem:[#allocation6 + $0xa08] sm:$0xff]
        %v1021 = vld [vmem:[#allocation6 + $0xa10] sm:$0xff]
        %v1022 = vld [vmem:[#allocation6 + $0xa18] sm:$0xff]
        %v1023 = vld [vmem:[#allocation6 + $0xa20] sm:$0xff]
        %v1024 = vld [vmem:[#allocation6 + $0xa28] sm:$0xff]
        %v1025 = vld [vmem:[#allocation6 + $0xa30] sm:$0xff]
        %v1026 = vld [vmem:[#allocation6 + $0xa38] sm:$0xff]
        %v1027 = vld [vmem:[#allocation6 + $0xa40] sm:$0xff]
        %v1028 = vld [vmem:[#allocation6 + $0xa48] sm:$0xff]
        %v1029 = vld [vmem:[#allocation6 + $0xa50] sm:$0xff]
        %v1030 = vld [vmem:[#allocation6 + $0xa58] sm:$0xff]
        %v1031 = vld [vmem:[#allocation6 + $0xa60] sm:$0xff]
        %v1032 = vld [vmem:[#allocation6 + $0xa68] sm:$0xff]
        %v1033 = vld [vmem:[#allocation6 + $0xa70] sm:$0xff]
        %v1034 = vld [vmem:[#allocation6 + $0xa78] sm:$0xff]
        %v1035 = vld [vmem:[#allocation6 + $0xa80] sm:$0xff]
        %v1036 = vld [vmem:[#allocation6 + $0xa88] sm:$0xff]
        %v1037 = vld [vmem:[#allocation6 + $0xa90] sm:$0xff]
        %v1038 = vld [vmem:[#allocation6 + $0xa98] sm:$0xff]
        %v1039 = vld [vmem:[#allocation6 + $0xaa0] sm:$0xff]
        %v1040 = vld [vmem:[#allocation6 + $0xaa8] sm:$0xff]
        %v1041 = vld [vmem:[#allocation6 + $0xab0] sm:$0xff]
        %v1042 = vld [vmem:[#allocation6 + $0xab8] sm:$0xff]
        %v1043 = vld [vmem:[#allocation6 + $0xac0] sm:$0xff]
        %v1044 = vld [vmem:[#allocation6 + $0xac8] sm:$0xff]
        %v1045 = vld [vmem:[#allocation6 + $0xad0] sm:$0xff]
        %v1046 = vld [vmem:[#allocation6 + $0xad8] sm:$0xff]
        %v1047 = vld [vmem:[#allocation6 + $0xae0] sm:$0xff]
        %v1048 = vld [vmem:[#allocation6 + $0xae8] sm:$0xff]
        %v1049 = vld [vmem:[#allocation6 + $0xaf0] sm:$0xff]
        %v1050 = vld [vmem:[#allocation6 + $0xaf8] sm:$0xff]
        %v1051 = vld [vmem:[#allocation6 + $0xb00] sm:$0xff]
        %v1052 = vld [vmem:[#allocation6 + $0xb08] sm:$0xff]
        %v1053 = vld [vmem:[#allocation6 + $0xb10] sm:$0xff]
        %v1054 = vld [vmem:[#allocation6 + $0xb18] sm:$0xff]
        %v1055 = vld [vmem:[#allocation6 + $0xb20] sm:$0xff]
        %v1056 = vld [vmem:[#allocation6 + $0xb28] sm:$0xff]
        %v1057 = vld [vmem:[#allocation6 + $0xb30] sm:$0xff]
        %v1058 = vld [vmem:[#allocation6 + $0xb38] sm:$0xff]
        %v1059 = vld [vmem:[#allocation6 + $0xb40] sm:$0xff]
        %v1060 = vld [vmem:[#allocation6 + $0xb48] sm:$0xff]
        %v1061 = vld [vmem:[#allocation6 + $0xb50] sm:$0xff]
        %v1062 = vld [vmem:[#allocation6 + $0xb58] sm:$0xff]
        %v1063 = vld [vmem:[#allocation6 + $0xb60] sm:$0xff]
        %v1064 = vld [vmem:[#allocation6 + $0xb68] sm:$0xff]
        %v1065 = vld [vmem:[#allocation6 + $0xb70] sm:$0xff]
        %v1066 = vld [vmem:[#allocation6 + $0xb78] sm:$0xff]
        %v1067 = vld [vmem:[#allocation6 + $0xb80] sm:$0xff]
        %v1068 = vld [vmem:[#allocation6 + $0xb88] sm:$0xff]
        %v1069 = vld [vmem:[#allocation6 + $0xb90] sm:$0xff]
        %v1070 = vld [vmem:[#allocation6 + $0xb98] sm:$0xff]
        %v1071 = vld [vmem:[#allocation6 + $0xba0] sm:$0xff]
        %v1072 = vld [vmem:[#allocation6 + $0xba8] sm:$0xff]
        %v1073 = vld [vmem:[#allocation6 + $0xbb0] sm:$0xff]
        %v1074 = vld [vmem:[#allocation6 + $0xbb8] sm:$0xff]
        %v1075 = vld [vmem:[#allocation6 + $0xbc0] sm:$0xff]
        %v1076 = vld [vmem:[#allocation6 + $0xbc8] sm:$0xff]
        %v1077 = vld [vmem:[#allocation6 + $0xbd0] sm:$0xff]
        %v1078 = vld [vmem:[#allocation6 + $0xbd8] sm:$0xff]
        %v1079 = vld [vmem:[#allocation6 + $0xbe0] sm:$0xff]
        %v1080 = vld [vmem:[#allocation6 + $0xbe8] sm:$0xff]
        %v1081 = vld [vmem:[#allocation6 + $0xbf0] sm:$0xff]
        %v1082 = vld [vmem:[#allocation6 + $0xbf8] sm:$0xff]
        %v1083 = vld [vmem:[#allocation7] sm:$0x1]
        %1084 = vmatpush.msra.mxu0 %v714
        %1085 = vmatpush.msra.mxu0 %v713
        %1086 = vmatpush.msra.mxu0 %v712
        %1087 = vmatpush.msra.mxu0 %v711
        %1088 = vmatpush.msra.mxu0 %v710
        %1089 = vmatpush.msra.mxu0 %v709
        %1090 = vmatpush.msra.mxu0 %v708
        %1091 = vmatpush.msra.mxu0 %v707
        %1092 = vmatpush.msra.mxu0 %v706
        %1093 = vmatpush.msra.mxu0 %v705
        %1094 = vmatpush.msra.mxu0 %v704
        %1095 = vmatpush.msra.mxu0 %v703
        %1096 = vmatpush.msra.mxu0 %v702
        %1097 = vmatpush.msra.mxu0 %v701
        %1098 = vmatpush.msra.mxu0 %v700
        %1099 = vmatpush.msra.mxu0 %v699
        %1100 = vmatmul.f32.gmra.mxu0 %v651
        %v1101 = vpop.f32.mrf.mxu0
        %v1102 = vadd.f32 %v1083, %v1101
        %1103 = vdwg.mxu0
        %1104 = vmatpush.msra.mxu0 %v730
        %1105 = vmatpush.msra.mxu0 %v729
        %1106 = vmatpush.msra.mxu0 %v728
        %1107 = vmatpush.msra.mxu0 %v727
        %1108 = vmatpush.msra.mxu0 %v726
        %1109 = vmatpush.msra.mxu0 %v725
        %1110 = vmatpush.msra.mxu0 %v724
        %1111 = vmatpush.msra.mxu0 %v723
        %1112 = vmatpush.msra.mxu0 %v722
        %1113 = vmatpush.msra.mxu0 %v721
        %1114 = vmatpush.msra.mxu0 %v720
        %1115 = vmatpush.msra.mxu0 %v719
        %1116 = vmatpush.msra.mxu0 %v718
        %1117 = vmatpush.msra.mxu0 %v717
        %1118 = vmatpush.msra.mxu0 %v716
        %1119 = vmatpush.msra.mxu0 %v715
        %1120 = vmatmul.f32.gmra.mxu0 %v652
        %v1121 = vpop.f32.mrf.mxu0
        %v1122 = vadd.f32 %v1102, %v1121
        %1123 = vdwg.mxu0
        %1124 = vmatpush.msra.mxu0 %v746
        %1125 = vmatpush.msra.mxu0 %v745
        %1126 = vmatpush.msra.mxu0 %v744
        %1127 = vmatpush.msra.mxu0 %v743
        %1128 = vmatpush.msra.mxu0 %v742
        %1129 = vmatpush.msra.mxu0 %v741
        %1130 = vmatpush.msra.mxu0 %v740
        %1131 = vmatpush.msra.mxu0 %v739
        %1132 = vmatpush.msra.mxu0 %v738
        %1133 = vmatpush.msra.mxu0 %v737
        %1134 = vmatpush.msra.mxu0 %v736
        %1135 = vmatpush.msra.mxu0 %v735
        %1136 = vmatpush.msra.mxu0 %v734
        %1137 = vmatpush.msra.mxu0 %v733
        %1138 = vmatpush.msra.mxu0 %v732
        %1139 = vmatpush.msra.mxu0 %v731
        %1140 = vmatmul.f32.gmra.mxu0 %v653
        %v1141 = vpop.f32.mrf.mxu0
        %v1142 = vadd.f32 %v1122, %v1141
        %1143 = vdwg.mxu0
        %1144 = vmatpush.msra.mxu0 %v762
        %1145 = vmatpush.msra.mxu0 %v761
        %1146 = vmatpush.msra.mxu0 %v760
        %1147 = vmatpush.msra.mxu0 %v759
        %1148 = vmatpush.msra.mxu0 %v758
        %1149 = vmatpush.msra.mxu0 %v757
        %1150 = vmatpush.msra.mxu0 %v756
        %1151 = vmatpush.msra.mxu0 %v755
        %1152 = vmatpush.msra.mxu0 %v754
        %1153 = vmatpush.msra.mxu0 %v753
        %1154 = vmatpush.msra.mxu0 %v752
        %1155 = vmatpush.msra.mxu0 %v751
        %1156 = vmatpush.msra.mxu0 %v750
        %1157 = vmatpush.msra.mxu0 %v749
        %1158 = vmatpush.msra.mxu0 %v748
        %1159 = vmatpush.msra.mxu0 %v747
        %1160 = vmatmul.f32.gmra.mxu0 %v657
        %v1161 = vpop.f32.mrf.mxu0
        %v1162 = vadd.f32 %v1142, %v1161
        %1163 = vdwg.mxu0
        %1164 = vmatpush.msra.mxu0 %v778
        %1165 = vmatpush.msra.mxu0 %v777
        %1166 = vmatpush.msra.mxu0 %v776
        %1167 = vmatpush.msra.mxu0 %v775
        %1168 = vmatpush.msra.mxu0 %v774
        %1169 = vmatpush.msra.mxu0 %v773
        %1170 = vmatpush.msra.mxu0 %v772
        %1171 = vmatpush.msra.mxu0 %v771
        %1172 = vmatpush.msra.mxu0 %v770
        %1173 = vmatpush.msra.mxu0 %v769
        %1174 = vmatpush.msra.mxu0 %v768
        %1175 = vmatpush.msra.mxu0 %v767
        %1176 = vmatpush.msra.mxu0 %v766
        %1177 = vmatpush.msra.mxu0 %v765
        %1178 = vmatpush.msra.mxu0 %v764
        %1179 = vmatpush.msra.mxu0 %v763
        %1180 = vmatmul.f32.gmra.mxu0 %v658
        %v1181 = vpop.f32.mrf.mxu0
        %v1182 = vadd.f32 %v1162, %v1181
        %1183 = vdwg.mxu0
        %1184 = vmatpush.msra.mxu0 %v794
        %1185 = vmatpush.msra.mxu0 %v793
        %1186 = vmatpush.msra.mxu0 %v792
        %1187 = vmatpush.msra.mxu0 %v791
        %1188 = vmatpush.msra.mxu0 %v790
        %1189 = vmatpush.msra.mxu0 %v789
        %1190 = vmatpush.msra.mxu0 %v788
        %1191 = vmatpush.msra.mxu0 %v787
        %1192 = vmatpush.msra.mxu0 %v786
        %1193 = vmatpush.msra.mxu0 %v785
        %1194 = vmatpush.msra.mxu0 %v784
        %1195 = vmatpush.msra.mxu0 %v783
        %1196 = vmatpush.msra.mxu0 %v782
        %1197 = vmatpush.msra.mxu0 %v781
        %1198 = vmatpush.msra.mxu0 %v780
        %1199 = vmatpush.msra.mxu0 %v779
        %1200 = vmatmul.f32.gmra.mxu0 %v659
        %v1201 = vpop.f32.mrf.mxu0
        %v1202 = vadd.f32 %v1182, %v1201
        %1203 = vdwg.mxu0
        %1204 = vmatpush.msra.mxu0 %v810
        %1205 = vmatpush.msra.mxu0 %v809
        %1206 = vmatpush.msra.mxu0 %v808
        %1207 = vmatpush.msra.mxu0 %v807
        %1208 = vmatpush.msra.mxu0 %v806
        %1209 = vmatpush.msra.mxu0 %v805
        %1210 = vmatpush.msra.mxu0 %v804
        %1211 = vmatpush.msra.mxu0 %v803
        %1212 = vmatpush.msra.mxu0 %v802
        %1213 = vmatpush.msra.mxu0 %v801
        %1214 = vmatpush.msra.mxu0 %v800
        %1215 = vmatpush.msra.mxu0 %v799
        %1216 = vmatpush.msra.mxu0 %v798
        %1217 = vmatpush.msra.mxu0 %v797
        %1218 = vmatpush.msra.mxu0 %v796
        %1219 = vmatpush.msra.mxu0 %v795
        %1220 = vmatmul.f32.gmra.mxu0 %v663
        %v1221 = vpop.f32.mrf.mxu0
        %v1222 = vadd.f32 %v1202, %v1221
        %1223 = vdwg.mxu0
        %1224 = vmatpush.msra.mxu0 %v826
        %1225 = vmatpush.msra.mxu0 %v825
        %1226 = vmatpush.msra.mxu0 %v824
        %1227 = vmatpush.msra.mxu0 %v823
        %1228 = vmatpush.msra.mxu0 %v822
        %1229 = vmatpush.msra.mxu0 %v821
        %1230 = vmatpush.msra.mxu0 %v820
        %1231 = vmatpush.msra.mxu0 %v819
        %1232 = vmatpush.msra.mxu0 %v818
        %1233 = vmatpush.msra.mxu0 %v817
        %1234 = vmatpush.msra.mxu0 %v816
        %1235 = vmatpush.msra.mxu0 %v815
        %1236 = vmatpush.msra.mxu0 %v814
        %1237 = vmatpush.msra.mxu0 %v813
        %1238 = vmatpush.msra.mxu0 %v812
        %1239 = vmatpush.msra.mxu0 %v811
        %1240 = vmatmul.f32.gmra.mxu0 %v664
        %v1241 = vpop.f32.mrf.mxu0
        %v1242 = vadd.f32 %v1222, %v1241
        %1243 = vdwg.mxu0
        %1244 = vmatpush.msra.mxu0 %v842
        %1245 = vmatpush.msra.mxu0 %v841
        %1246 = vmatpush.msra.mxu0 %v840
        %1247 = vmatpush.msra.mxu0 %v839
        %1248 = vmatpush.msra.mxu0 %v838
        %1249 = vmatpush.msra.mxu0 %v837
        %1250 = vmatpush.msra.mxu0 %v836
        %1251 = vmatpush.msra.mxu0 %v835
        %1252 = vmatpush.msra.mxu0 %v834
        %1253 = vmatpush.msra.mxu0 %v833
        %1254 = vmatpush.msra.mxu0 %v832
        %1255 = vmatpush.msra.mxu0 %v831
        %1256 = vmatpush.msra.mxu0 %v830
        %1257 = vmatpush.msra.mxu0 %v829
        %1258 = vmatpush.msra.mxu0 %v828
        %1259 = vmatpush.msra.mxu0 %v827
        %1260 = vmatmul.f32.gmra.mxu0 %v665
        %v1261 = vpop.f32.mrf.mxu0
        %v1262 = vadd.f32 %v1242, %v1261
        %1263 = vdwg.mxu0
        %1264 = vmatpush.msra.mxu0 %v858
        %1265 = vmatpush.msra.mxu0 %v857
        %1266 = vmatpush.msra.mxu0 %v856
        %1267 = vmatpush.msra.mxu0 %v855
        %1268 = vmatpush.msra.mxu0 %v854
        %1269 = vmatpush.msra.mxu0 %v853
        %1270 = vmatpush.msra.mxu0 %v852
        %1271 = vmatpush.msra.mxu0 %v851
        %1272 = vmatpush.msra.mxu0 %v850
        %1273 = vmatpush.msra.mxu0 %v849
        %1274 = vmatpush.msra.mxu0 %v848
        %1275 = vmatpush.msra.mxu0 %v847
        %1276 = vmatpush.msra.mxu0 %v846
        %1277 = vmatpush.msra.mxu0 %v845
        %1278 = vmatpush.msra.mxu0 %v844
        %1279 = vmatpush.msra.mxu0 %v843
        %1280 = vmatmul.f32.gmra.mxu0 %v669
        %v1281 = vpop.f32.mrf.mxu0
        %v1282 = vadd.f32 %v1262, %v1281
        %1283 = vdwg.mxu0
        %1284 = vmatpush.msra.mxu0 %v874
        %1285 = vmatpush.msra.mxu0 %v873
        %1286 = vmatpush.msra.mxu0 %v872
        %1287 = vmatpush.msra.mxu0 %v871
        %1288 = vmatpush.msra.mxu0 %v870
        %1289 = vmatpush.msra.mxu0 %v869
        %1290 = vmatpush.msra.mxu0 %v868
        %1291 = vmatpush.msra.mxu0 %v867
        %1292 = vmatpush.msra.mxu0 %v866
        %1293 = vmatpush.msra.mxu0 %v865
        %1294 = vmatpush.msra.mxu0 %v864
        %1295 = vmatpush.msra.mxu0 %v863
        %1296 = vmatpush.msra.mxu0 %v862
        %1297 = vmatpush.msra.mxu0 %v861
        %1298 = vmatpush.msra.mxu0 %v860
        %1299 = vmatpush.msra.mxu0 %v859
        %1300 = vmatmul.f32.gmra.mxu0 %v670
        %v1301 = vpop.f32.mrf.mxu0
        %v1302 = vadd.f32 %v1282, %v1301
        %1303 = vdwg.mxu0
        %1304 = vmatpush.msra.mxu0 %v890
        %1305 = vmatpush.msra.mxu0 %v889
        %1306 = vmatpush.msra.mxu0 %v888
        %1307 = vmatpush.msra.mxu0 %v887
        %1308 = vmatpush.msra.mxu0 %v886
        %1309 = vmatpush.msra.mxu0 %v885
        %1310 = vmatpush.msra.mxu0 %v884
        %1311 = vmatpush.msra.mxu0 %v883
        %1312 = vmatpush.msra.mxu0 %v882
        %1313 = vmatpush.msra.mxu0 %v881
        %1314 = vmatpush.msra.mxu0 %v880
        %1315 = vmatpush.msra.mxu0 %v879
        %1316 = vmatpush.msra.mxu0 %v878
        %1317 = vmatpush.msra.mxu0 %v877
        %1318 = vmatpush.msra.mxu0 %v876
        %1319 = vmatpush.msra.mxu0 %v875
        %1320 = vmatmul.f32.gmra.mxu0 %v671
        %v1321 = vpop.f32.mrf.mxu0
        %v1322 = vadd.f32 %v1302, %v1321
        %1323 = vdwg.mxu0
        %1324 = vmatpush.msra.mxu0 %v906
        %1325 = vmatpush.msra.mxu0 %v905
        %1326 = vmatpush.msra.mxu0 %v904
        %1327 = vmatpush.msra.mxu0 %v903
        %1328 = vmatpush.msra.mxu0 %v902
        %1329 = vmatpush.msra.mxu0 %v901
        %1330 = vmatpush.msra.mxu0 %v900
        %1331 = vmatpush.msra.mxu0 %v899
        %1332 = vmatpush.msra.mxu0 %v898
        %1333 = vmatpush.msra.mxu0 %v897
        %1334 = vmatpush.msra.mxu0 %v896
        %1335 = vmatpush.msra.mxu0 %v895
        %1336 = vmatpush.msra.mxu0 %v894
        %1337 = vmatpush.msra.mxu0 %v893
        %1338 = vmatpush.msra.mxu0 %v892
        %1339 = vmatpush.msra.mxu0 %v891
        %1340 = vmatmul.f32.gmra.mxu0 %v675
        %v1341 = vpop.f32.mrf.mxu0
        %v1342 = vadd.f32 %v1322, %v1341
        %1343 = vdwg.mxu0
        %1344 = vmatpush.msra.mxu0 %v922
        %1345 = vmatpush.msra.mxu0 %v921
        %1346 = vmatpush.msra.mxu0 %v920
        %1347 = vmatpush.msra.mxu0 %v919
        %1348 = vmatpush.msra.mxu0 %v918
        %1349 = vmatpush.msra.mxu0 %v917
        %1350 = vmatpush.msra.mxu0 %v916
        %1351 = vmatpush.msra.mxu0 %v915
        %1352 = vmatpush.msra.mxu0 %v914
        %1353 = vmatpush.msra.mxu0 %v913
        %1354 = vmatpush.msra.mxu0 %v912
        %1355 = vmatpush.msra.mxu0 %v911
        %1356 = vmatpush.msra.mxu0 %v910
        %1357 = vmatpush.msra.mxu0 %v909
        %1358 = vmatpush.msra.mxu0 %v908
        %1359 = vmatpush.msra.mxu0 %v907
        %1360 = vmatmul.f32.gmra.mxu0 %v676
        %v1361 = vpop.f32.mrf.mxu0
        %v1362 = vadd.f32 %v1342, %v1361
        %1363 = vdwg.mxu0
        %1364 = vmatpush.msra.mxu0 %v938
        %1365 = vmatpush.msra.mxu0 %v937
        %1366 = vmatpush.msra.mxu0 %v936
        %1367 = vmatpush.msra.mxu0 %v935
        %1368 = vmatpush.msra.mxu0 %v934
        %1369 = vmatpush.msra.mxu0 %v933
        %1370 = vmatpush.msra.mxu0 %v932
        %1371 = vmatpush.msra.mxu0 %v931
        %1372 = vmatpush.msra.mxu0 %v930
        %1373 = vmatpush.msra.mxu0 %v929
        %1374 = vmatpush.msra.mxu0 %v928
        %1375 = vmatpush.msra.mxu0 %v927
        %1376 = vmatpush.msra.mxu0 %v926
        %1377 = vmatpush.msra.mxu0 %v925
        %1378 = vmatpush.msra.mxu0 %v924
        %1379 = vmatpush.msra.mxu0 %v923
        %1380 = vmatmul.f32.gmra.mxu0 %v677
        %v1381 = vpop.f32.mrf.mxu0
        %v1382 = vadd.f32 %v1362, %v1381
        %1383 = vdwg.mxu0
        %1384 = vmatpush.msra.mxu0 %v954
        %1385 = vmatpush.msra.mxu0 %v953
        %1386 = vmatpush.msra.mxu0 %v952
        %1387 = vmatpush.msra.mxu0 %v951
        %1388 = vmatpush.msra.mxu0 %v950
        %1389 = vmatpush.msra.mxu0 %v949
        %1390 = vmatpush.msra.mxu0 %v948
        %1391 = vmatpush.msra.mxu0 %v947
        %1392 = vmatpush.msra.mxu0 %v946
        %1393 = vmatpush.msra.mxu0 %v945
        %1394 = vmatpush.msra.mxu0 %v944
        %1395 = vmatpush.msra.mxu0 %v943
        %1396 = vmatpush.msra.mxu0 %v942
        %1397 = vmatpush.msra.mxu0 %v941
        %1398 = vmatpush.msra.mxu0 %v940
        %1399 = vmatpush.msra.mxu0 %v939
        %1400 = vmatmul.f32.gmra.mxu0 %v681
        %v1401 = vpop.f32.mrf.mxu0
        %v1402 = vadd.f32 %v1382, %v1401
        %1403 = vdwg.mxu0
        %1404 = vmatpush.msra.mxu0 %v970
        %1405 = vmatpush.msra.mxu0 %v969
        %1406 = vmatpush.msra.mxu0 %v968
        %1407 = vmatpush.msra.mxu0 %v967
        %1408 = vmatpush.msra.mxu0 %v966
        %1409 = vmatpush.msra.mxu0 %v965
        %1410 = vmatpush.msra.mxu0 %v964
        %1411 = vmatpush.msra.mxu0 %v963
        %1412 = vmatpush.msra.mxu0 %v962
        %1413 = vmatpush.msra.mxu0 %v961
        %1414 = vmatpush.msra.mxu0 %v960
        %1415 = vmatpush.msra.mxu0 %v959
        %1416 = vmatpush.msra.mxu0 %v958
        %1417 = vmatpush.msra.mxu0 %v957
        %1418 = vmatpush.msra.mxu0 %v956
        %1419 = vmatpush.msra.mxu0 %v955
        %1420 = vmatmul.f32.gmra.mxu0 %v682
        %v1421 = vpop.f32.mrf.mxu0
        %v1422 = vadd.f32 %v1402, %v1421
        %1423 = vdwg.mxu0
        %1424 = vmatpush.msra.mxu0 %v986
        %1425 = vmatpush.msra.mxu0 %v985
        %1426 = vmatpush.msra.mxu0 %v984
        %1427 = vmatpush.msra.mxu0 %v983
        %1428 = vmatpush.msra.mxu0 %v982
        %1429 = vmatpush.msra.mxu0 %v981
        %1430 = vmatpush.msra.mxu0 %v980
        %1431 = vmatpush.msra.mxu0 %v979
        %1432 = vmatpush.msra.mxu0 %v978
        %1433 = vmatpush.msra.mxu0 %v977
        %1434 = vmatpush.msra.mxu0 %v976
        %1435 = vmatpush.msra.mxu0 %v975
        %1436 = vmatpush.msra.mxu0 %v974
        %1437 = vmatpush.msra.mxu0 %v973
        %1438 = vmatpush.msra.mxu0 %v972
        %1439 = vmatpush.msra.mxu0 %v971
        %1440 = vmatmul.f32.gmra.mxu0 %v683
        %v1441 = vpop.f32.mrf.mxu0
        %v1442 = vadd.f32 %v1422, %v1441
        %1443 = vdwg.mxu0
        %1444 = vmatpush.msra.mxu0 %v1002
        %1445 = vmatpush.msra.mxu0 %v1001
        %1446 = vmatpush.msra.mxu0 %v1000
        %1447 = vmatpush.msra.mxu0 %v999
        %1448 = vmatpush.msra.mxu0 %v998
        %1449 = vmatpush.msra.mxu0 %v997
        %1450 = vmatpush.msra.mxu0 %v996
        %1451 = vmatpush.msra.mxu0 %v995
        %1452 = vmatpush.msra.mxu0 %v994
        %1453 = vmatpush.msra.mxu0 %v993
        %1454 = vmatpush.msra.mxu0 %v992
        %1455 = vmatpush.msra.mxu0 %v991
        %1456 = vmatpush.msra.mxu0 %v990
        %1457 = vmatpush.msra.mxu0 %v989
        %1458 = vmatpush.msra.mxu0 %v988
        %1459 = vmatpush.msra.mxu0 %v987
        %1460 = vmatmul.f32.gmra.mxu0 %v687
        %v1461 = vpop.f32.mrf.mxu0
        %v1462 = vadd.f32 %v1442, %v1461
        %1463 = vdwg.mxu0
        %1464 = vmatpush.msra.mxu0 %v1018
        %1465 = vmatpush.msra.mxu0 %v1017
        %1466 = vmatpush.msra.mxu0 %v1016
        %1467 = vmatpush.msra.mxu0 %v1015
        %1468 = vmatpush.msra.mxu0 %v1014
        %1469 = vmatpush.msra.mxu0 %v1013
        %1470 = vmatpush.msra.mxu0 %v1012
        %1471 = vmatpush.msra.mxu0 %v1011
        %1472 = vmatpush.msra.mxu0 %v1010
        %1473 = vmatpush.msra.mxu0 %v1009
        %1474 = vmatpush.msra.mxu0 %v1008
        %1475 = vmatpush.msra.mxu0 %v1007
        %1476 = vmatpush.msra.mxu0 %v1006
        %1477 = vmatpush.msra.mxu0 %v1005
        %1478 = vmatpush.msra.mxu0 %v1004
        %1479 = vmatpush.msra.mxu0 %v1003
        %1480 = vmatmul.f32.gmra.mxu0 %v688
        %v1481 = vpop.f32.mrf.mxu0
        %v1482 = vadd.f32 %v1462, %v1481
        %1483 = vdwg.mxu0
        %1484 = vmatpush.msra.mxu0 %v1034
        %1485 = vmatpush.msra.mxu0 %v1033
        %1486 = vmatpush.msra.mxu0 %v1032
        %1487 = vmatpush.msra.mxu0 %v1031
        %1488 = vmatpush.msra.mxu0 %v1030
        %1489 = vmatpush.msra.mxu0 %v1029
        %1490 = vmatpush.msra.mxu0 %v1028
        %1491 = vmatpush.msra.mxu0 %v1027
        %1492 = vmatpush.msra.mxu0 %v1026
        %1493 = vmatpush.msra.mxu0 %v1025
        %1494 = vmatpush.msra.mxu0 %v1024
        %1495 = vmatpush.msra.mxu0 %v1023
        %1496 = vmatpush.msra.mxu0 %v1022
        %1497 = vmatpush.msra.mxu0 %v1021
        %1498 = vmatpush.msra.mxu0 %v1020
        %1499 = vmatpush.msra.mxu0 %v1019
        %1500 = vmatmul.f32.gmra.mxu0 %v689
        %v1501 = vpop.f32.mrf.mxu0
        %v1502 = vadd.f32 %v1482, %v1501
        %1503 = vdwg.mxu0
        %1504 = vmatpush.msra.mxu0 %v1050
        %1505 = vmatpush.msra.mxu0 %v1049
        %1506 = vmatpush.msra.mxu0 %v1048
        %1507 = vmatpush.msra.mxu0 %v1047
        %1508 = vmatpush.msra.mxu0 %v1046
        %1509 = vmatpush.msra.mxu0 %v1045
        %1510 = vmatpush.msra.mxu0 %v1044
        %1511 = vmatpush.msra.mxu0 %v1043
        %1512 = vmatpush.msra.mxu0 %v1042
        %1513 = vmatpush.msra.mxu0 %v1041
        %1514 = vmatpush.msra.mxu0 %v1040
        %1515 = vmatpush.msra.mxu0 %v1039
        %1516 = vmatpush.msra.mxu0 %v1038
        %1517 = vmatpush.msra.mxu0 %v1037
        %1518 = vmatpush.msra.mxu0 %v1036
        %1519 = vmatpush.msra.mxu0 %v1035
        %1520 = vmatmul.f32.gmra.mxu0 %v693
        %v1521 = vpop.f32.mrf.mxu0
        %v1522 = vadd.f32 %v1502, %v1521
        %1523 = vdwg.mxu0
        %1524 = vmatpush.msra.mxu0 %v1066
        %1525 = vmatpush.msra.mxu0 %v1065
        %1526 = vmatpush.msra.mxu0 %v1064
        %1527 = vmatpush.msra.mxu0 %v1063
        %1528 = vmatpush.msra.mxu0 %v1062
        %1529 = vmatpush.msra.mxu0 %v1061
        %1530 = vmatpush.msra.mxu0 %v1060
        %1531 = vmatpush.msra.mxu0 %v1059
        %1532 = vmatpush.msra.mxu0 %v1058
        %1533 = vmatpush.msra.mxu0 %v1057
        %1534 = vmatpush.msra.mxu0 %v1056
        %1535 = vmatpush.msra.mxu0 %v1055
        %1536 = vmatpush.msra.mxu0 %v1054
        %1537 = vmatpush.msra.mxu0 %v1053
        %1538 = vmatpush.msra.mxu0 %v1052
        %1539 = vmatpush.msra.mxu0 %v1051
        %1540 = vmatmul.f32.gmra.mxu0 %v694
        %v1541 = vpop.f32.mrf.mxu0
        %v1542 = vadd.f32 %v1522, %v1541
        %1543 = vdwg.mxu0
        %1544 = vmatpush.msra.mxu0 %v1082
        %1545 = vmatpush.msra.mxu0 %v1081
        %1546 = vmatpush.msra.mxu0 %v1080
        %1547 = vmatpush.msra.mxu0 %v1079
        %1548 = vmatpush.msra.mxu0 %v1078
        %1549 = vmatpush.msra.mxu0 %v1077
        %1550 = vmatpush.msra.mxu0 %v1076
        %1551 = vmatpush.msra.mxu0 %v1075
        %1552 = vmatpush.msra.mxu0 %v1074
        %1553 = vmatpush.msra.mxu0 %v1073
        %1554 = vmatpush.msra.mxu0 %v1072
        %1555 = vmatpush.msra.mxu0 %v1071
        %1556 = vmatpush.msra.mxu0 %v1070
        %1557 = vmatpush.msra.mxu0 %v1069
        %1558 = vmatpush.msra.mxu0 %v1068
        %1559 = vmatpush.msra.mxu0 %v1067
        %1560 = vmatmul.f32.gmra.mxu0 %v695
        %v1561 = vpop.f32.mrf.mxu0
        %v1562 = vadd.f32 %v1542, %v1561
        %1563 = vdwg.mxu0
        %1564 = vst [vmem:[%s451] sm:$0x1] %v1562
        %v1565 = vld [vmem:[%s373] sm:$0x1]
        %v1566 = vmul.f32 %v1562, 1.442695
        %v1567 = vpow.pop %v1566
        %1569 = vrot.lane.b32.xlu0 %v1567, 96
        %v1570 = vpop.permute.xlu0 %1569
        %v1572 = vmul.f32 %v1565, %v1570
        %v1573 = vadd.f32 %v1572, %v1562
        %v1574 = vld [vmem:[#allocation9] sm:$0xff]
        %v1575 = vld [vmem:[#allocation9 + $0x8] sm:$0xff]
        %v1576 = vld [vmem:[#allocation9 + $0x10] sm:$0xff]
        %v1577 = vld [vmem:[#allocation9 + $0x18] sm:$0xff]
        %v1578 = vld [vmem:[#allocation9 + $0x20] sm:$0xff]
        %v1579 = vld [vmem:[#allocation9 + $0x28] sm:$0xff]
        %v1580 = vld [vmem:[#allocation9 + $0x30] sm:$0xff]
        %v1581 = vld [vmem:[#allocation9 + $0x38] sm:$0xff]
        %v1582 = vld [vmem:[#allocation9 + $0x40] sm:$0xff]
        %v1583 = vld [vmem:[#allocation9 + $0x48] sm:$0xff]
        %v1584 = vld [vmem:[#allocation9 + $0x50] sm:$0xff]
        %v1585 = vld [vmem:[#allocation9 + $0x58] sm:$0xff]
        %v1586 = vld [vmem:[#allocation9 + $0x60] sm:$0xff]
        %v1587 = vld [vmem:[#allocation9 + $0x68] sm:$0xff]
        %v1588 = vld [vmem:[#allocation9 + $0x70] sm:$0xff]
        %v1589 = vld [vmem:[#allocation9 + $0x78] sm:$0xff]
        %v1590 = vld [vmem:[#allocation9 + $0x80] sm:$0xff]
        %v1591 = vld [vmem:[#allocation9 + $0x88] sm:$0xff]
        %v1592 = vld [vmem:[#allocation9 + $0x90] sm:$0xff]
        %v1593 = vld [vmem:[#allocation9 + $0x98] sm:$0xff]
        %v1594 = vld [vmem:[#allocation9 + $0xa0] sm:$0xff]
        %v1595 = vld [vmem:[#allocation9 + $0xa8] sm:$0xff]
        %v1596 = vld [vmem:[#allocation9 + $0xb0] sm:$0xff]
        %v1597 = vld [vmem:[#allocation9 + $0xb8] sm:$0xff]
        %v1598 = vld [vmem:[#allocation9 + $0xc0] sm:$0xff]
        %v1599 = vld [vmem:[#allocation9 + $0xc8] sm:$0xff]
        %v1600 = vld [vmem:[#allocation9 + $0xd0] sm:$0xff]
        %v1601 = vld [vmem:[#allocation9 + $0xd8] sm:$0xff]
        %v1602 = vld [vmem:[#allocation9 + $0xe0] sm:$0xff]
        %v1603 = vld [vmem:[#allocation9 + $0xe8] sm:$0xff]
        %v1604 = vld [vmem:[#allocation9 + $0xf0] sm:$0xff]
        %v1605 = vld [vmem:[#allocation9 + $0xf8] sm:$0xff]
        %v1606 = vld [vmem:[#allocation10] sm:$0xff]
        %v1608 = vperm.slane %v1606, 0
        %v1609 = vperm.slane %v1606, 1
        %v1610 = vperm.slane %v1606, 2
        %v1611 = vperm.slane %v1606, 3
        %v1612 = vperm.slane %v1606, 4
        %v1613 = vperm.slane %v1606, 5
        %v1614 = vperm.slane %v1606, 6
        %v1615 = vperm.slane %v1606, 7
        %vm1624 = vcmask 261120
        %v1626 = vsel %vm1624, %v1573, 0
        %1628 = vmatpush.msra.mxu0 0.0
        %1629 = vmatpush.msra.mxu0 0.0
        %1630 = vmatpush.msra.mxu0 0.0
        %1631 = vmatpush.msra.mxu0 0.0
        %1632 = vmatpush.msra.mxu0 0.0
        %1633 = vmatpush.msra.mxu0 0.0
        %1634 = vmatpush.msra.mxu0 0.0
        %1635 = vmatpush.msra.mxu0 0.0
        %1636 = vmatpush.msra.mxu0 0.0
        %1637 = vmatpush.msra.mxu0 0.0
        %1638 = vmatpush.msra.mxu0 0.0
        %1639 = vmatpush.msra.mxu0 0.0
        %1640 = vmatpush.msra.mxu0 %v1598
        %1641 = vmatpush.msra.mxu0 %v1590
        %1642 = vmatpush.msra.mxu0 %v1582
        %1643 = vmatpush.msra.mxu0 %v1574
        %1644 = vmatmul.f32.gmra.mxu0 %v1626
        %v1645 = vpop.f32.mrf.mxu0
        %v1646 = vadd.f32 %v1608, %v1645
        %1647 = vdwg.mxu0
        %1648 = vmatpush.msra.mxu0 0.0
        %1649 = vmatpush.msra.mxu0 0.0
        %1650 = vmatpush.msra.mxu0 0.0
        %1651 = vmatpush.msra.mxu0 0.0
        %1652 = vmatpush.msra.mxu0 0.0
        %1653 = vmatpush.msra.mxu0 0.0
        %1654 = vmatpush.msra.mxu0 0.0
        %1655 = vmatpush.msra.mxu0 0.0
        %1656 = vmatpush.msra.mxu0 0.0
        %1657 = vmatpush.msra.mxu0 0.0
        %1658 = vmatpush.msra.mxu0 0.0
        %1659 = vmatpush.msra.mxu0 0.0
        %1660 = vmatpush.msra.mxu0 %v1599
        %1661 = vmatpush.msra.mxu0 %v1591
        %1662 = vmatpush.msra.mxu0 %v1583
        %1663 = vmatpush.msra.mxu0 %v1575
        %1664 = vmatmul.f32.gmra.mxu0 %v1626
        %v1665 = vpop.f32.mrf.mxu0
        %v1666 = vadd.f32 %v1609, %v1665
        %1667 = vdwg.mxu0
        %1668 = vmatpush.msra.mxu0 0.0
        %1669 = vmatpush.msra.mxu0 0.0
        %1670 = vmatpush.msra.mxu0 0.0
        %1671 = vmatpush.msra.mxu0 0.0
        %1672 = vmatpush.msra.mxu0 0.0
        %1673 = vmatpush.msra.mxu0 0.0
        %1674 = vmatpush.msra.mxu0 0.0
        %1675 = vmatpush.msra.mxu0 0.0
        %1676 = vmatpush.msra.mxu0 0.0
        %1677 = vmatpush.msra.mxu0 0.0
        %1678 = vmatpush.msra.mxu0 0.0
        %1679 = vmatpush.msra.mxu0 0.0
        %1680 = vmatpush.msra.mxu0 %v1600
        %1681 = vmatpush.msra.mxu0 %v1592
        %1682 = vmatpush.msra.mxu0 %v1584
        %1683 = vmatpush.msra.mxu0 %v1576
        %1684 = vmatmul.f32.gmra.mxu0 %v1626
        %v1685 = vpop.f32.mrf.mxu0
        %v1686 = vadd.f32 %v1610, %v1685
        %1687 = vdwg.mxu0
        %1688 = vmatpush.msra.mxu0 0.0
        %1689 = vmatpush.msra.mxu0 0.0
        %1690 = vmatpush.msra.mxu0 0.0
        %1691 = vmatpush.msra.mxu0 0.0
        %1692 = vmatpush.msra.mxu0 0.0
        %1693 = vmatpush.msra.mxu0 0.0
        %1694 = vmatpush.msra.mxu0 0.0
        %1695 = vmatpush.msra.mxu0 0.0
        %1696 = vmatpush.msra.mxu0 0.0
        %1697 = vmatpush.msra.mxu0 0.0
        %1698 = vmatpush.msra.mxu0 0.0
        %1699 = vmatpush.msra.mxu0 0.0
        %1700 = vmatpush.msra.mxu0 %v1601
        %1701 = vmatpush.msra.mxu0 %v1593
        %1702 = vmatpush.msra.mxu0 %v1585
        %1703 = vmatpush.msra.mxu0 %v1577
        %1704 = vmatmul.f32.gmra.mxu0 %v1626
        %v1705 = vpop.f32.mrf.mxu0
        %v1706 = vadd.f32 %v1611, %v1705
        %1707 = vdwg.mxu0
        %1708 = vmatpush.msra.mxu0 0.0
        %1709 = vmatpush.msra.mxu0 0.0
        %1710 = vmatpush.msra.mxu0 0.0
        %1711 = vmatpush.msra.mxu0 0.0
        %1712 = vmatpush.msra.mxu0 0.0
        %1713 = vmatpush.msra.mxu0 0.0
        %1714 = vmatpush.msra.mxu0 0.0
        %1715 = vmatpush.msra.mxu0 0.0
        %1716 = vmatpush.msra.mxu0 0.0
        %1717 = vmatpush.msra.mxu0 0.0
        %1718 = vmatpush.msra.mxu0 0.0
        %1719 = vmatpush.msra.mxu0 0.0
        %1720 = vmatpush.msra.mxu0 %v1602
        %1721 = vmatpush.msra.mxu0 %v1594
        %1722 = vmatpush.msra.mxu0 %v1586
        %1723 = vmatpush.msra.mxu0 %v1578
        %1724 = vmatmul.f32.gmra.mxu0 %v1626
        %v1725 = vpop.f32.mrf.mxu0
        %v1726 = vadd.f32 %v1612, %v1725
        %1727 = vdwg.mxu0
        %1728 = vmatpush.msra.mxu0 0.0
        %1729 = vmatpush.msra.mxu0 0.0
        %1730 = vmatpush.msra.mxu0 0.0
        %1731 = vmatpush.msra.mxu0 0.0
        %1732 = vmatpush.msra.mxu0 0.0
        %1733 = vmatpush.msra.mxu0 0.0
        %1734 = vmatpush.msra.mxu0 0.0
        %1735 = vmatpush.msra.mxu0 0.0
        %1736 = vmatpush.msra.mxu0 0.0
        %1737 = vmatpush.msra.mxu0 0.0
        %1738 = vmatpush.msra.mxu0 0.0
        %1739 = vmatpush.msra.mxu0 0.0
        %1740 = vmatpush.msra.mxu0 %v1603
        %1741 = vmatpush.msra.mxu0 %v1595
        %1742 = vmatpush.msra.mxu0 %v1587
        %1743 = vmatpush.msra.mxu0 %v1579
        %1744 = vmatmul.f32.gmra.mxu0 %v1626
        %v1745 = vpop.f32.mrf.mxu0
        %v1746 = vadd.f32 %v1613, %v1745
        %1747 = vdwg.mxu0
        %1748 = vmatpush.msra.mxu0 0.0
        %1749 = vmatpush.msra.mxu0 0.0
        %1750 = vmatpush.msra.mxu0 0.0
        %1751 = vmatpush.msra.mxu0 0.0
        %1752 = vmatpush.msra.mxu0 0.0
        %1753 = vmatpush.msra.mxu0 0.0
        %1754 = vmatpush.msra.mxu0 0.0
        %1755 = vmatpush.msra.mxu0 0.0
        %1756 = vmatpush.msra.mxu0 0.0
        %1757 = vmatpush.msra.mxu0 0.0
        %1758 = vmatpush.msra.mxu0 0.0
        %1759 = vmatpush.msra.mxu0 0.0
        %1760 = vmatpush.msra.mxu0 %v1604
        %1761 = vmatpush.msra.mxu0 %v1596
        %1762 = vmatpush.msra.mxu0 %v1588
        %1763 = vmatpush.msra.mxu0 %v1580
        %1764 = vmatmul.f32.gmra.mxu0 %v1626
        %v1765 = vpop.f32.mrf.mxu0
        %v1766 = vadd.f32 %v1614, %v1765
        %1767 = vdwg.mxu0
        %1768 = vmatpush.msra.mxu0 0.0
        %1769 = vmatpush.msra.mxu0 0.0
        %1770 = vmatpush.msra.mxu0 0.0
        %1771 = vmatpush.msra.mxu0 0.0
        %1772 = vmatpush.msra.mxu0 0.0
        %1773 = vmatpush.msra.mxu0 0.0
        %1774 = vmatpush.msra.mxu0 0.0
        %1775 = vmatpush.msra.mxu0 0.0
        %1776 = vmatpush.msra.mxu0 0.0
        %1777 = vmatpush.msra.mxu0 0.0
        %1778 = vmatpush.msra.mxu0 0.0
        %1779 = vmatpush.msra.mxu0 0.0
        %1780 = vmatpush.msra.mxu0 %v1605
        %1781 = vmatpush.msra.mxu0 %v1597
        %1782 = vmatpush.msra.mxu0 %v1589
        %1783 = vmatpush.msra.mxu0 %v1581
        %1784 = vmatmul.f32.gmra.mxu0 %v1626
        %v1785 = vpop.f32.mrf.mxu0
        %v1786 = vadd.f32 %v1615, %v1785
        %1787 = vdwg.mxu0
        %v1788 = vtanh.pop %v1646
        %v1789 = vtanh.pop %v1666
        %v1790 = vtanh.pop %v1686
        %v1791 = vtanh.pop %v1706
        %v1792 = vtanh.pop %v1726
        %v1793 = vtanh.pop %v1746
        %v1794 = vtanh.pop %v1766
        %v1795 = vtanh.pop %v1786
        %v1804 = vrot.slane %v1789, 7
        %v1805 = vrot.slane %v1790, 6
        %v1806 = vrot.slane %v1791, 5
        %v1807 = vrot.slane %v1792, 4
        %v1808 = vrot.slane %v1793, 3
        %v1809 = vrot.slane %v1794, 2
        %v1810 = vrot.slane %v1795, 1
        %vm1811 = vcmask 1040384
        %v1812 = vsel %vm1811, %v1788, %v1804
        %vm1813 = vcmask 1042434
        %v1814 = vsel %vm1813, %v1805, %v1806
        %vm1815 = vcmask 1041408
        %v1816 = vsel %vm1815, %v1812, %v1814
        %vm1817 = vcmask 1044484
        %v1818 = vsel %vm1817, %v1807, %v1808
        %vm1819 = vcmask 1046534
        %v1820 = vsel %vm1819, %v1809, %v1810
        %vm1821 = vcmask 1045508
        %v1822 = vsel %vm1821, %v1818, %v1820
        %vm1823 = vcmask 1043456
        %v1824 = vsel %vm1823, %v1816, %v1822
        %1826 = vst [vmem:[%s448] sm:$0xff] %v1824
        %p1827 = scmp.lt.s32.totalorder %s27, 1
        %s1828 = scalar_select %p1827, %s27, 1
        %s1829 = smul.addr %s1828, 8
        %s1830 = scalar_lea.vmem %s8, %s1829
        %p1831 = scmp.lt.s32.totalorder %s27, 1
        %s1832 = scalar_select %p1831, %s27, 1
        %s1833 = scalar_lea.vmem %s9, %s1832
        // Predicated region
        $region77: #{vae_forward.1} parent=51 // pred_check
          %p1834 = pneg %p223
        $region78: #{vae_forward.1} parent=51 // pred_check_branch
          %1836 = sbr.rel (%p1834) target = $region80
        $region79: #{vae_forward.1} parent=51 // pred_region
          _
        $region80: #{vae_forward.1} parent=51 // pred_fallthru
          _
        // Predicated region
        $region81: #{vae_forward.1} parent=51 // pred_check
          %p1837 = pneg %p249
        $region82: #{vae_forward.1} parent=51 // pred_check_branch
          %1839 = sbr.rel (%p1837) target = $region84
        $region83: #{vae_forward.1} parent=51 // pred_region
          _
        $region84: #{vae_forward.1} parent=51 // pred_fallthru
          _
      $region52: #{vae_forward.1} parent=5 // pred_fallthru
        _
      %p1840 = scmp.le.s32.totalorder 2, %s22
      // Predicated region
      $region85: #{vae_forward.1} parent=5 // pred_check
        %p1841 = pneg %p1840
      $region86: #{vae_forward.1} parent=5 // pred_check_branch
        %1843 = sbr.rel (%p1841) target = $region88
      $region87: #{vae_forward.1} parent=5 // pred_region
        %s1844 = ssub.s32 %s22, 2
        // Predicated region
        $region89: #{vae_forward.1} parent=87 // pred_check
          %p1845 = pneg %p229
        $region90: #{vae_forward.1} parent=87 // pred_check_branch
          %1847 = sbr.rel (%p1845) target = $region92
        $region91: #{vae_forward.1} parent=87 // pred_region
          %p1848 = scmp.lt.s32.totalorder %s28, 1
          %s1849 = scalar_select %p1848, %s28, 1
          %s1850 = smul.addr %s1849, 8
          %s1851 = scalar_lea.vmem %s8, %s1850
        $region92: #{vae_forward.1} parent=87 // pred_fallthru
          _
        // Predicated region
        $region93: #{vae_forward.1} parent=87 // pred_check
          %p1852 = pneg %p255
        $region94: #{vae_forward.1} parent=87 // pred_check_branch
          %1854 = sbr.rel (%p1852) target = $region96
        $region95: #{vae_forward.1} parent=87 // pred_region
          %p1855 = scmp.lt.s32.totalorder %s28, 1
          %s1856 = scalar_select %p1855, %s28, 1
          %s1857 = scalar_lea.vmem %s9, %s1856
        $region96: #{vae_forward.1} parent=87 // pred_fallthru
          _
      $region88: #{vae_forward.1} parent=5 // pred_fallthru
        _
    $region6: #{vae_forward.1} parent=1 // loop_footer
      %s26 = sadd.s32 1, %s22
    $region7: #{vae_forward.1} parent=1 // loop_footer_branch
      %21 = sbr.rel target = $region3
    $region8: #{vae_forward.1} parent=1 // loop_exit
      _
    %1858 = vsyncpa [#allocation3], 1
    %s1859 = scalar_lea.sflag [#allocation3], 1
    %1860 = vsyncpa %s1859, 1
    %1861 = vsyncpa [#allocation5], 1
    %1862 = vsyncpa [#allocation8], 1
    %1863 = vsyncpa [#allocation11], 1

</llo_original>
